<compile_context>
chip_gen: v5e
topology: v5e:2x2
jax: 0.10.0
libtpu: 0.0.40
codegen_flags: <defaults>
</compile_context>

<pallas_src>
import jax
import jax.numpy as jnp
from jax.experimental import pallas as pl
from jax.experimental.pallas import tpu as pltpu  # noqa: F401  (grid-less call; kept for CompilerParams when scaling up)

# -------- model hyper-parameters (small, consistent with the module) --------
DIM = 32        # dim
DEPTH = 2       # depth
HEADS = 4       # heads
DIM_HEAD = 8    # dim_head
MLP_DIM = 64    # mlp_dim
INNER = HEADS * DIM_HEAD
B = 2           # batch
S = 8           # sequence length
EPS = 1e-5      # nn.LayerNorm default eps

# ---- packing layout ----
VEC_W = max(2 * DIM, MLP_DIM)        # row width of the vector slab
WCOL = 3 * 128                       # matrix slab columns (128-aligned regions)
OFF_QKV, OFF_WOUT, OFF_W1 = 0, 128, 256


def _layer_norm(v, g, b):
    # Uncentered-variance form: both lane reductions are independent.
    mu = jnp.mean(v, axis=-1, keepdims=True)
    var = jnp.mean(v * v, axis=-1, keepdims=True) - mu * mu
    return (v - mu) * jax.lax.rsqrt(var + EPS) * g + b


def transformer_kernel(x_ref, wmat_ref, w2_ref, vec_ref, o_ref):
    scale = DIM_HEAD ** -0.5
    BH = B * HEADS
    bf16 = jnp.bfloat16

    xf = x_ref[...].astype(jnp.float32)          # (B*S, DIM) residual stream
    vr = vec_ref[...]                            # (4*DEPTH+1, VEC_W) f32

    for l in range(DEPTH):                       # static unroll (DEPTH == 2)
        wm = wmat_ref[l]                         # (DIM, WCOL) bf16
        wqkv = wm[:, OFF_QKV:OFF_QKV + 3 * INNER]     # (DIM, 3*INNER)
        wout = wm[:, OFF_WOUT:OFF_WOUT + DIM]         # (INNER, DIM)
        w1 = wm[:, OFF_W1:OFF_W1 + MLP_DIM]           # (DIM, MLP_DIM)
        w2 = w2_ref[l]                                # (MLP_DIM, DIM) bf16

        ln1g = vr[4 * l + 0:4 * l + 1, 0:DIM]
        ln1b = vr[4 * l + 0:4 * l + 1, DIM:2 * DIM]
        ln2g = vr[4 * l + 1:4 * l + 2, 0:DIM]
        ln2b = vr[4 * l + 1:4 * l + 2, DIM:2 * DIM]
        bout = vr[4 * l + 2:4 * l + 3, 0:DIM]
        b2 = vr[4 * l + 2:4 * l + 3, DIM:2 * DIM]
        b1 = vr[4 * l + 3:4 * l + 4, 0:MLP_DIM]

        # ---------------- PreNorm + Attention ----------------
        h = _layer_norm(xf, ln1g, ln1b)                              # (B*S, DIM)
        qkv = jnp.dot(h.astype(bf16), wqkv,
                      preferred_element_type=jnp.float32)            # (B*S, 3*INNER)

        def split_heads(t):
            # (B*S, INNER) -> (B*HEADS, S, DIM_HEAD) using static lane slices
            # and leading-dim stacks only (no lane-splitting reshape needed).
            parts = [t[:, hh * DIM_HEAD:(hh + 1) * DIM_HEAD].reshape(B, S, DIM_HEAD)
                     for hh in range(HEADS)]
            return jnp.stack(parts, axis=1).reshape(BH, S, DIM_HEAD)

        qh = split_heads(qkv[:, 0:INNER]).astype(bf16)
        kh = split_heads(qkv[:, INNER:2 * INNER]).astype(bf16)
        vh = split_heads(qkv[:, 2 * INNER:3 * INNER]).astype(bf16)

        dots = jnp.einsum('nqd,nkd->nqk', qh, kh,
                          preferred_element_type=jnp.float32) * scale  # (BH,S,S)
        m = jnp.max(dots, axis=-1, keepdims=True)
        e = jnp.exp(dots - m)
        p_attn = e * pl.reciprocal(jnp.sum(e, axis=-1, keepdims=True), approx=True)
        ctx = jnp.einsum('nqk,nkd->nqd', p_attn.astype(bf16), vh,
                         preferred_element_type=jnp.float32)           # (BH,S,Dh)

        # Merge heads back to (B*S, INNER): leading-dim indexing + lane concat.
        ctx = ctx.reshape(B, HEADS, S, DIM_HEAD)
        ctx = jnp.concatenate([ctx[:, hh] for hh in range(HEADS)], axis=-1)
        ctx = ctx.reshape(B * S, INNER)

        attn_out = jnp.dot(ctx.astype(bf16), wout,
                           preferred_element_type=jnp.float32) + bout
        xf = xf + attn_out                                             # residual

        # ---------------- PreNorm + FeedForward ----------------
        hf = _layer_norm(xf, ln2g, ln2b)
        hf = jnp.dot(hf.astype(bf16), w1, preferred_element_type=jnp.float32) + b1
        hf = jax.nn.gelu(hf, approximate=True)      # tanh GELU (EUP path)
        hf = jnp.dot(hf.astype(bf16), w2, preferred_element_type=jnp.float32) + b2
        xf = xf + hf                                                   # residual

    # Final LayerNorm, single lane-dense store.
    fng = vr[4 * DEPTH:4 * DEPTH + 1, 0:DIM]
    fnb = vr[4 * DEPTH:4 * DEPTH + 1, DIM:2 * DIM]
    o_ref[...] = _layer_norm(xf, fng, fnb).astype(o_ref.dtype)


def _pack_params(p):
    """Pack all weights into 3 slabs (fewer DMAs, no duplication, 128-aligned
    column regions so in-kernel slices need no lane rotates)."""
    bf16 = jnp.bfloat16
    wmat = jnp.zeros((DEPTH, DIM, WCOL), bf16)
    wmat = wmat.at[:, :, OFF_QKV:OFF_QKV + 3 * INNER].set(p["wqkv"].astype(bf16))
    wmat = wmat.at[:, :, OFF_WOUT:OFF_WOUT + DIM].set(p["wout"].astype(bf16))
    wmat = wmat.at[:, :, OFF_W1:OFF_W1 + MLP_DIM].set(p["w1"].astype(bf16))
    w2s = p["w2"].astype(bf16)                       # (DEPTH, MLP_DIM, DIM)

    vec = jnp.zeros((4 * DEPTH + 1, VEC_W), jnp.float32)
    for l in range(DEPTH):
        vec = vec.at[4 * l + 0, 0:DIM].set(p["ln1g"][l, 0])
        vec = vec.at[4 * l + 0, DIM:2 * DIM].set(p["ln1b"][l, 0])
        vec = vec.at[4 * l + 1, 0:DIM].set(p["ln2g"][l, 0])
        vec = vec.at[4 * l + 1, DIM:2 * DIM].set(p["ln2b"][l, 0])
        vec = vec.at[4 * l + 2, 0:DIM].set(p["bout"][l, 0])
        vec = vec.at[4 * l + 2, DIM:2 * DIM].set(p["b2"][l, 0])
        vec = vec.at[4 * l + 3, 0:MLP_DIM].set(p["b1"][l, 0])
    vec = vec.at[4 * DEPTH, 0:DIM].set(p["fng"][0, 0])
    vec = vec.at[4 * DEPTH, DIM:2 * DIM].set(p["fnb"][0, 0])
    return wmat, w2s, vec


@jax.jit
def transformer_forward(x, p):
    wmat, w2s, vec = _pack_params(p)
    # Single grid-less invocation: every operand is a whole VMEM-resident block.
    y = pl.pallas_call(
        transformer_kernel,
        out_shape=jax.ShapeDtypeStruct((B * S, DIM), x.dtype),
    )(x.reshape(B * S, DIM), wmat, w2s, vec)
    return y.reshape(B, S, DIM)


def transformer_reference(x, p):
    """Pure-JAX f32 reference mirroring the PyTorch forward pass."""
    def ln(v, g, b):
        mu = v.mean(-1, keepdims=True)
        var = ((v - mu) ** 2).mean(-1, keepdims=True)
        return (v - mu) / jnp.sqrt(var + EPS) * g + b

    for l in range(DEPTH):
        h = ln(x, p["ln1g"][l, 0], p["ln1b"][l, 0])
        qkv = h @ p["wqkv"][l]
        q, k, v = jnp.split(qkv, 3, axis=-1)
        sh = lambda t: t.reshape(B, S, HEADS, DIM_HEAD).transpose(0, 2, 1, 3)
        q, k, v = sh(q), sh(k), sh(v)
        dots = jnp.einsum("bhqd,bhkd->bhqk", q, k) * (DIM_HEAD ** -0.5)
        a = jax.nn.softmax(dots, axis=-1)
        o = jnp.einsum("bhqk,bhkd->bhqd", a, v)
        o = o.transpose(0, 2, 1, 3).reshape(B, S, INNER)
        x = x + (o @ p["wout"][l] + p["bout"][l, 0])
        h = ln(x, p["ln2g"][l, 0], p["ln2b"][l, 0])
        h = jax.nn.gelu(h @ p["w1"][l] + p["b1"][l, 0], approximate=False)
        x = x + (h @ p["w2"][l] + p["b2"][l, 0])
    return ln(x, p["fng"][0, 0], p["fnb"][0, 0])


def init_params(key):
    ks = jax.random.split(key, 6)
    f32 = jnp.float32
    return {
        "ln1g": jnp.ones((DEPTH, 1, DIM), f32),
        "ln1b": jnp.zeros((DEPTH, 1, DIM), f32),
        "wqkv": 0.05 * jax.random.normal(ks[0], (DEPTH, DIM, 3 * INNER), f32),
        "wout": 0.05 * jax.random.normal(ks[1], (DEPTH, INNER, DIM), f32),
        "bout": 0.01 * jax.random.normal(ks[2], (DEPTH, 1, DIM), f32),
        "ln2g": jnp.ones((DEPTH, 1, DIM), f32),
        "ln2b": jnp.zeros((DEPTH, 1, DIM), f32),
        "w1": 0.05 * jax.random.normal(ks[3], (DEPTH, DIM, MLP_DIM), f32),
        "b1": 0.01 * jax.random.normal(ks[4], (DEPTH, 1, MLP_DIM), f32),
        "w2": 0.05 * jax.random.normal(ks[5], (DEPTH, MLP_DIM, DIM), f32),
        "b2": jnp.zeros((DEPTH, 1, DIM), f32),
        "fng": jnp.ones((1, 1, DIM), f32),
        "fnb": jnp.zeros((1, 1, DIM), f32),
    }


if __name__ == "__main__":
    key = jax.random.PRNGKey(0)
    k_x, k_p = jax.random.split(key)
    x = jax.random.normal(k_x, (B, S, DIM), jnp.float32)
    params = init_params(k_p)

    y = jax.block_until_ready(transformer_forward(x, params))
    y_ref = jax.block_until_ready(transformer_reference(x, params))

    assert y.shape == (B, S, DIM), y.shape
    # Tolerance slightly looser than 2e-3: bf16 MXU operands, tanh-GELU and the
    # approximate softmax reciprocal vs. the exact-f32 reference.
    if not jnp.allclose(y, y_ref, atol=5e-3, rtol=5e-3):
        max_err = float(jnp.max(jnp.abs(y - y_ref)))
        raise AssertionError(f"kernel/reference mismatch, max abs err = {max_err}")
    print("KERNEL_OK")
</pallas_src>

<mosaic_0001>
module attributes {stable_mosaic.version = 11 : i64} {
  func.func @transformer_kernel(%arg0: memref<16x32xf32, #tpu.memory_space<vmem>>, %arg1: memref<2x32x384xbf16, #tpu.memory_space<vmem>>, %arg2: memref<2x64x32xbf16, #tpu.memory_space<vmem>>, %arg3: memref<9x64xf32, #tpu.memory_space<vmem>>, %arg4: memref<16x32xf32, #tpu.memory_space<vmem>>) attributes {dimension_semantics = [], scalar_prefetch = 0 : i64, scratch_operands = 0 : i64, tpu.core_type = #tpu.core_type<tc>} {
    %c0 = arith.constant 0 : index
    %c0_0 = arith.constant 0 : index
    %0 = vector.load %arg0[%c0, %c0_0] : memref<16x32xf32, #tpu.memory_space<vmem>>, vector<16x32xf32>
    %c0_1 = arith.constant 0 : index
    %c0_2 = arith.constant 0 : index
    %1 = vector.load %arg3[%c0_1, %c0_2] : memref<9x64xf32, #tpu.memory_space<vmem>>, vector<9x64xf32>
    %c0_3 = arith.constant 0 : index
    %c0_4 = arith.constant 0 : index
    %c0_5 = arith.constant 0 : index
    %2 = vector.load %arg1[%c0_3, %c0_4, %c0_5] : memref<2x32x384xbf16, #tpu.memory_space<vmem>>, vector<1x32x384xbf16>
    %3 = vector.shape_cast %2 : vector<1x32x384xbf16> to vector<32x384xbf16>
    %4 = vector.extract_strided_slice %3 {offsets = [0, 0], sizes = [32, 96], strides = [1, 1]} : vector<32x384xbf16> to vector<32x96xbf16>
    %5 = vector.extract_strided_slice %3 {offsets = [0, 128], sizes = [32, 32], strides = [1, 1]} : vector<32x384xbf16> to vector<32x32xbf16>
    %6 = vector.extract_strided_slice %3 {offsets = [0, 256], sizes = [32, 64], strides = [1, 1]} : vector<32x384xbf16> to vector<32x64xbf16>
    %c0_6 = arith.constant 0 : index
    %c0_7 = arith.constant 0 : index
    %c0_8 = arith.constant 0 : index
    %7 = vector.load %arg2[%c0_6, %c0_7, %c0_8] : memref<2x64x32xbf16, #tpu.memory_space<vmem>>, vector<1x64x32xbf16>
    %8 = vector.shape_cast %7 : vector<1x64x32xbf16> to vector<64x32xbf16>
    %9 = vector.extract_strided_slice %1 {offsets = [0, 0], sizes = [1, 32], strides = [1, 1]} : vector<9x64xf32> to vector<1x32xf32>
    %10 = vector.extract_strided_slice %1 {offsets = [0, 32], sizes = [1, 32], strides = [1, 1]} : vector<9x64xf32> to vector<1x32xf32>
    %11 = vector.extract_strided_slice %1 {offsets = [1, 0], sizes = [1, 32], strides = [1, 1]} : vector<9x64xf32> to vector<1x32xf32>
    %12 = vector.extract_strided_slice %1 {offsets = [1, 32], sizes = [1, 32], strides = [1, 1]} : vector<9x64xf32> to vector<1x32xf32>
    %13 = vector.extract_strided_slice %1 {offsets = [2, 0], sizes = [1, 32], strides = [1, 1]} : vector<9x64xf32> to vector<1x32xf32>
    %14 = vector.extract_strided_slice %1 {offsets = [2, 32], sizes = [1, 32], strides = [1, 1]} : vector<9x64xf32> to vector<1x32xf32>
    %15 = vector.extract_strided_slice %1 {offsets = [3, 0], sizes = [1, 64], strides = [1, 1]} : vector<9x64xf32> to vector<1x64xf32>
    %cst = arith.constant dense<0.000000e+00> : vector<16xf32>
    %16 = vector.multi_reduction <add>, %0, %cst [1] : vector<16x32xf32> to vector<16xf32>
    %17 = vector.shape_cast %16 : vector<16xf32> to vector<16x1xf32>
    %cst_9 = arith.constant 3.200000e+01 : f32
    %18 = vector.broadcast %cst_9 : f32 to vector<16x1xf32>
    %19 = arith.divf %17, %18 : vector<16x1xf32>
    %20 = arith.mulf %0, %0 : vector<16x32xf32>
    %cst_10 = arith.constant dense<0.000000e+00> : vector<16xf32>
    %21 = vector.multi_reduction <add>, %20, %cst_10 [1] : vector<16x32xf32> to vector<16xf32>
    %22 = vector.shape_cast %21 : vector<16xf32> to vector<16x1xf32>
    %cst_11 = arith.constant 3.200000e+01 : f32
    %23 = vector.broadcast %cst_11 : f32 to vector<16x1xf32>
    %24 = arith.divf %22, %23 : vector<16x1xf32>
    %25 = arith.mulf %19, %19 : vector<16x1xf32>
    %26 = arith.subf %24, %25 : vector<16x1xf32>
    %27 = vector.broadcast %19 : vector<16x1xf32> to vector<16x32xf32>
    %28 = arith.subf %0, %27 : vector<16x32xf32>
    %cst_12 = arith.constant 9.99999974E-6 : f32
    %29 = vector.broadcast %cst_12 : f32 to vector<16x1xf32>
    %30 = arith.addf %26, %29 : vector<16x1xf32>
    %31 = math.rsqrt %30 : vector<16x1xf32>
    %32 = vector.broadcast %31 : vector<16x1xf32> to vector<16x32xf32>
    %33 = arith.mulf %28, %32 : vector<16x32xf32>
    %34 = vector.broadcast %9 : vector<1x32xf32> to vector<16x32xf32>
    %35 = arith.mulf %33, %34 : vector<16x32xf32>
    %36 = vector.broadcast %10 : vector<1x32xf32> to vector<16x32xf32>
    %37 = arith.addf %35, %36 : vector<16x32xf32>
    %38 = arith.truncf %37 : vector<16x32xf32> to vector<16x32xbf16>
    %cst_13 = arith.constant dense<0.000000e+00> : vector<16x96xf32>
    %39 = tpu.matmul %38, %4, %cst_13 {dimension_numbers = #tpu.dot_dimension_numbers<[1], [0], [0], [1], [0, 0, 1, 1], [], []>} : vector<16x32xbf16>, vector<32x96xbf16>, vector<16x96xf32> -> vector<16x96xf32>
    %40 = vector.extract_strided_slice %39 {offsets = [0, 0], sizes = [16, 32], strides = [1, 1]} : vector<16x96xf32> to vector<16x32xf32>
    %41 = vector.extract_strided_slice %40 {offsets = [0, 0], sizes = [16, 8], strides = [1, 1]} : vector<16x32xf32> to vector<16x8xf32>
    %42 = vector.shape_cast %41 : vector<16x8xf32> to vector<2x8x8xf32>
    %43 = vector.extract_strided_slice %40 {offsets = [0, 8], sizes = [16, 8], strides = [1, 1]} : vector<16x32xf32> to vector<16x8xf32>
    %44 = vector.shape_cast %43 : vector<16x8xf32> to vector<2x8x8xf32>
    %45 = vector.extract_strided_slice %40 {offsets = [0, 16], sizes = [16, 8], strides = [1, 1]} : vector<16x32xf32> to vector<16x8xf32>
    %46 = vector.shape_cast %45 : vector<16x8xf32> to vector<2x8x8xf32>
    %47 = vector.extract_strided_slice %40 {offsets = [0, 24], sizes = [16, 8], strides = [1, 1]} : vector<16x32xf32> to vector<16x8xf32>
    %48 = vector.shape_cast %47 : vector<16x8xf32> to vector<2x8x8xf32>
    %49 = vector.shape_cast %42 : vector<2x8x8xf32> to vector<2x1x8x8xf32>
    %50 = vector.shape_cast %44 : vector<2x8x8xf32> to vector<2x1x8x8xf32>
    %51 = vector.shape_cast %46 : vector<2x8x8xf32> to vector<2x1x8x8xf32>
    %52 = vector.shape_cast %48 : vector<2x8x8xf32> to vector<2x1x8x8xf32>
    %53 = tpu.concatenate %49, %50, %51, %52 in 1 : vector<2x1x8x8xf32>, vector<2x1x8x8xf32>, vector<2x1x8x8xf32>, vector<2x1x8x8xf32> -> vector<2x4x8x8xf32>
    %54 = vector.shape_cast %53 : vector<2x4x8x8xf32> to vector<8x8x8xf32>
    %55 = arith.truncf %54 : vector<8x8x8xf32> to vector<8x8x8xbf16>
    %56 = vector.extract_strided_slice %39 {offsets = [0, 32], sizes = [16, 32], strides = [1, 1]} : vector<16x96xf32> to vector<16x32xf32>
    %57 = vector.extract_strided_slice %56 {offsets = [0, 0], sizes = [16, 8], strides = [1, 1]} : vector<16x32xf32> to vector<16x8xf32>
    %58 = vector.shape_cast %57 : vector<16x8xf32> to vector<2x8x8xf32>
    %59 = vector.extract_strided_slice %56 {offsets = [0, 8], sizes = [16, 8], strides = [1, 1]} : vector<16x32xf32> to vector<16x8xf32>
    %60 = vector.shape_cast %59 : vector<16x8xf32> to vector<2x8x8xf32>
    %61 = vector.extract_strided_slice %56 {offsets = [0, 16], sizes = [16, 8], strides = [1, 1]} : vector<16x32xf32> to vector<16x8xf32>
    %62 = vector.shape_cast %61 : vector<16x8xf32> to vector<2x8x8xf32>
    %63 = vector.extract_strided_slice %56 {offsets = [0, 24], sizes = [16, 8], strides = [1, 1]} : vector<16x32xf32> to vector<16x8xf32>
    %64 = vector.shape_cast %63 : vector<16x8xf32> to vector<2x8x8xf32>
    %65 = vector.shape_cast %58 : vector<2x8x8xf32> to vector<2x1x8x8xf32>
    %66 = vector.shape_cast %60 : vector<2x8x8xf32> to vector<2x1x8x8xf32>
    %67 = vector.shape_cast %62 : vector<2x8x8xf32> to vector<2x1x8x8xf32>
    %68 = vector.shape_cast %64 : vector<2x8x8xf32> to vector<2x1x8x8xf32>
    %69 = tpu.concatenate %65, %66, %67, %68 in 1 : vector<2x1x8x8xf32>, vector<2x1x8x8xf32>, vector<2x1x8x8xf32>, vector<2x1x8x8xf32> -> vector<2x4x8x8xf32>
    %70 = vector.shape_cast %69 : vector<2x4x8x8xf32> to vector<8x8x8xf32>
    %71 = arith.truncf %70 : vector<8x8x8xf32> to vector<8x8x8xbf16>
    %72 = vector.extract_strided_slice %39 {offsets = [0, 64], sizes = [16, 32], strides = [1, 1]} : vector<16x96xf32> to vector<16x32xf32>
    %73 = vector.extract_strided_slice %72 {offsets = [0, 0], sizes = [16, 8], strides = [1, 1]} : vector<16x32xf32> to vector<16x8xf32>
    %74 = vector.shape_cast %73 : vector<16x8xf32> to vector<2x8x8xf32>
    %75 = vector.extract_strided_slice %72 {offsets = [0, 8], sizes = [16, 8], strides = [1, 1]} : vector<16x32xf32> to vector<16x8xf32>
    %76 = vector.shape_cast %75 : vector<16x8xf32> to vector<2x8x8xf32>
    %77 = vector.extract_strided_slice %72 {offsets = [0, 16], sizes = [16, 8], strides = [1, 1]} : vector<16x32xf32> to vector<16x8xf32>
    %78 = vector.shape_cast %77 : vector<16x8xf32> to vector<2x8x8xf32>
    %79 = vector.extract_strided_slice %72 {offsets = [0, 24], sizes = [16, 8], strides = [1, 1]} : vector<16x32xf32> to vector<16x8xf32>
    %80 = vector.shape_cast %79 : vector<16x8xf32> to vector<2x8x8xf32>
    %81 = vector.shape_cast %74 : vector<2x8x8xf32> to vector<2x1x8x8xf32>
    %82 = vector.shape_cast %76 : vector<2x8x8xf32> to vector<2x1x8x8xf32>
    %83 = vector.shape_cast %78 : vector<2x8x8xf32> to vector<2x1x8x8xf32>
    %84 = vector.shape_cast %80 : vector<2x8x8xf32> to vector<2x1x8x8xf32>
    %85 = tpu.concatenate %81, %82, %83, %84 in 1 : vector<2x1x8x8xf32>, vector<2x1x8x8xf32>, vector<2x1x8x8xf32>, vector<2x1x8x8xf32> -> vector<2x4x8x8xf32>
    %86 = vector.shape_cast %85 : vector<2x4x8x8xf32> to vector<8x8x8xf32>
    %87 = arith.truncf %86 : vector<8x8x8xf32> to vector<8x8x8xbf16>
    "tpu.trace_start"() <{level = 10 : i32, message = "nqd,nkd->nqk"}> : () -> ()
    %cst_14 = arith.constant dense<0.000000e+00> : vector<8x8x8xf32>
    %88 = tpu.matmul %55, %71, %cst_14 {dimension_numbers = #tpu.dot_dimension_numbers<[2], [2], [1], [1], [0, 0, 0, 1, 1, 1], [0], [0]>} : vector<8x8x8xbf16>, vector<8x8x8xbf16>, vector<8x8x8xf32> -> vector<8x8x8xf32>
    "tpu.trace_stop"() : () -> ()
    %cst_15 = arith.constant 0.353553385 : f32
    %89 = vector.broadcast %cst_15 : f32 to vector<8x8x8xf32>
    %90 = arith.mulf %88, %89 : vector<8x8x8xf32>
    %cst_16 = arith.constant dense<0xFF800000> : vector<8x8xf32>
    %91 = vector.multi_reduction <maximumf>, %90, %cst_16 [2] : vector<8x8x8xf32> to vector<8x8xf32>
    %92 = vector.shape_cast %91 : vector<8x8xf32> to vector<8x8x1xf32>
    %93 = vector.broadcast %92 : vector<8x8x1xf32> to vector<8x8x8xf32>
    %94 = arith.subf %90, %93 : vector<8x8x8xf32>
    %95 = math.exp %94 : vector<8x8x8xf32>
    %cst_17 = arith.constant dense<0.000000e+00> : vector<8x8xf32>
    %96 = vector.multi_reduction <add>, %95, %cst_17 [2] : vector<8x8x8xf32> to vector<8x8xf32>
    %97 = vector.shape_cast %96 : vector<8x8xf32> to vector<8x8x1xf32>
    %98 = tpu.reciprocal %97 {approx = true} : vector<8x8x1xf32> -> vector<8x8x1xf32>
    %99 = vector.broadcast %98 : vector<8x8x1xf32> to vector<8x8x8xf32>
    %100 = arith.mulf %95, %99 : vector<8x8x8xf32>
    %101 = arith.truncf %100 : vector<8x8x8xf32> to vector<8x8x8xbf16>
    "tpu.trace_start"() <{level = 10 : i32, message = "nqk,nkd->nqd"}> : () -> ()
    %cst_18 = arith.constant dense<0.000000e+00> : vector<8x8x8xf32>
    %102 = tpu.matmul %101, %87, %cst_18 {dimension_numbers = #tpu.dot_dimension_numbers<[2], [1], [1], [2], [0, 0, 0, 1, 1, 2], [0], [0]>} : vector<8x8x8xbf16>, vector<8x8x8xbf16>, vector<8x8x8xf32> -> vector<8x8x8xf32>
    "tpu.trace_stop"() : () -> ()
    %103 = vector.shape_cast %102 : vector<8x8x8xf32> to vector<2x4x8x8xf32>
    %104 = vector.extract_strided_slice %103 {offsets = [0, 0, 0, 0], sizes = [2, 1, 8, 8], strides = [1, 1, 1, 1]} : vector<2x4x8x8xf32> to vector<2x1x8x8xf32>
    %105 = vector.shape_cast %104 : vector<2x1x8x8xf32> to vector<2x8x8xf32>
    %106 = vector.extract_strided_slice %103 {offsets = [0, 1, 0, 0], sizes = [2, 1, 8, 8], strides = [1, 1, 1, 1]} : vector<2x4x8x8xf32> to vector<2x1x8x8xf32>
    %107 = vector.shape_cast %106 : vector<2x1x8x8xf32> to vector<2x8x8xf32>
    %108 = vector.extract_strided_slice %103 {offsets = [0, 2, 0, 0], sizes = [2, 1, 8, 8], strides = [1, 1, 1, 1]} : vector<2x4x8x8xf32> to vector<2x1x8x8xf32>
    %109 = vector.shape_cast %108 : vector<2x1x8x8xf32> to vector<2x8x8xf32>
    %110 = vector.extract_strided_slice %103 {offsets = [0, 3, 0, 0], sizes = [2, 1, 8, 8], strides = [1, 1, 1, 1]} : vector<2x4x8x8xf32> to vector<2x1x8x8xf32>
    %111 = vector.shape_cast %110 : vector<2x1x8x8xf32> to vector<2x8x8xf32>
    %112 = tpu.concatenate %105, %107, %109, %111 in 2 : vector<2x8x8xf32>, vector<2x8x8xf32>, vector<2x8x8xf32>, vector<2x8x8xf32> -> vector<2x8x32xf32>
    %113 = vector.shape_cast %112 : vector<2x8x32xf32> to vector<16x32xf32>
    %114 = arith.truncf %113 : vector<16x32xf32> to vector<16x32xbf16>
    %cst_19 = arith.constant dense<0.000000e+00> : vector<16x32xf32>
    %115 = tpu.matmul %114, %5, %cst_19 {dimension_numbers = #tpu.dot_dimension_numbers<[1], [0], [0], [1], [0, 0, 1, 1], [], []>} : vector<16x32xbf16>, vector<32x32xbf16>, vector<16x32xf32> -> vector<16x32xf32>
    %116 = vector.broadcast %13 : vector<1x32xf32> to vector<16x32xf32>
    %117 = arith.addf %115, %116 : vector<16x32xf32>
    %118 = arith.addf %0, %117 : vector<16x32xf32>
    %cst_20 = arith.constant dense<0.000000e+00> : vector<16xf32>
    %119 = vector.multi_reduction <add>, %118, %cst_20 [1] : vector<16x32xf32> to vector<16xf32>
    %120 = vector.shape_cast %119 : vector<16xf32> to vector<16x1xf32>
    %cst_21 = arith.constant 3.200000e+01 : f32
    %121 = vector.broadcast %cst_21 : f32 to vector<16x1xf32>
    %122 = arith.divf %120, %121 : vector<16x1xf32>
    %123 = arith.mulf %118, %118 : vector<16x32xf32>
    %cst_22 = arith.constant dense<0.000000e+00> : vector<16xf32>
    %124 = vector.multi_reduction <add>, %123, %cst_22 [1] : vector<16x32xf32> to vector<16xf32>
    %125 = vector.shape_cast %124 : vector<16xf32> to vector<16x1xf32>
    %cst_23 = arith.constant 3.200000e+01 : f32
    %126 = vector.broadcast %cst_23 : f32 to vector<16x1xf32>
    %127 = arith.divf %125, %126 : vector<16x1xf32>
    %128 = arith.mulf %122, %122 : vector<16x1xf32>
    %129 = arith.subf %127, %128 : vector<16x1xf32>
    %130 = vector.broadcast %122 : vector<16x1xf32> to vector<16x32xf32>
    %131 = arith.subf %118, %130 : vector<16x32xf32>
    %cst_24 = arith.constant 9.99999974E-6 : f32
    %132 = vector.broadcast %cst_24 : f32 to vector<16x1xf32>
    %133 = arith.addf %129, %132 : vector<16x1xf32>
    %134 = math.rsqrt %133 : vector<16x1xf32>
    %135 = vector.broadcast %134 : vector<16x1xf32> to vector<16x32xf32>
    %136 = arith.mulf %131, %135 : vector<16x32xf32>
    %137 = vector.broadcast %11 : vector<1x32xf32> to vector<16x32xf32>
    %138 = arith.mulf %136, %137 : vector<16x32xf32>
    %139 = vector.broadcast %12 : vector<1x32xf32> to vector<16x32xf32>
    %140 = arith.addf %138, %139 : vector<16x32xf32>
    %141 = arith.truncf %140 : vector<16x32xf32> to vector<16x32xbf16>
    %cst_25 = arith.constant dense<0.000000e+00> : vector<16x64xf32>
    %142 = tpu.matmul %141, %6, %cst_25 {dimension_numbers = #tpu.dot_dimension_numbers<[1], [0], [0], [1], [0, 0, 1, 1], [], []>} : vector<16x32xbf16>, vector<32x64xbf16>, vector<16x64xf32> -> vector<16x64xf32>
    %143 = vector.broadcast %15 : vector<1x64xf32> to vector<16x64xf32>
    %144 = arith.addf %142, %143 : vector<16x64xf32>
    %145 = arith.mulf %144, %144 : vector<16x64xf32>
    %146 = arith.mulf %144, %145 : vector<16x64xf32>
    %cst_26 = arith.constant 4.471500e-02 : f32
    %147 = vector.broadcast %cst_26 : f32 to vector<16x64xf32>
    %148 = arith.mulf %147, %146 : vector<16x64xf32>
    %149 = arith.addf %144, %148 : vector<16x64xf32>
    %cst_27 = arith.constant 0.797884583 : f32
    %150 = vector.broadcast %cst_27 : f32 to vector<16x64xf32>
    %151 = arith.mulf %150, %149 : vector<16x64xf32>
    %152 = math.tanh %151 : vector<16x64xf32>
    %cst_28 = arith.constant 1.000000e+00 : f32
    %153 = vector.broadcast %cst_28 : f32 to vector<16x64xf32>
    %154 = arith.addf %153, %152 : vector<16x64xf32>
    %cst_29 = arith.constant 5.000000e-01 : f32
    %155 = vector.broadcast %cst_29 : f32 to vector<16x64xf32>
    %156 = arith.mulf %155, %154 : vector<16x64xf32>
    %157 = arith.mulf %144, %156 : vector<16x64xf32>
    %158 = arith.truncf %157 : vector<16x64xf32> to vector<16x64xbf16>
    %cst_30 = arith.constant dense<0.000000e+00> : vector<16x32xf32>
    %159 = tpu.matmul %158, %8, %cst_30 {dimension_numbers = #tpu.dot_dimension_numbers<[1], [0], [0], [1], [0, 0, 1, 1], [], []>} : vector<16x64xbf16>, vector<64x32xbf16>, vector<16x32xf32> -> vector<16x32xf32>
    %160 = vector.broadcast %14 : vector<1x32xf32> to vector<16x32xf32>
    %161 = arith.addf %159, %160 : vector<16x32xf32>
    %162 = arith.addf %118, %161 : vector<16x32xf32>
    %c1 = arith.constant 1 : index
    %c0_31 = arith.constant 0 : index
    %c0_32 = arith.constant 0 : index
    %163 = vector.load %arg1[%c1, %c0_31, %c0_32] : memref<2x32x384xbf16, #tpu.memory_space<vmem>>, vector<1x32x384xbf16>
    %164 = vector.shape_cast %163 : vector<1x32x384xbf16> to vector<32x384xbf16>
    %165 = vector.extract_strided_slice %164 {offsets = [0, 0], sizes = [32, 96], strides = [1, 1]} : vector<32x384xbf16> to vector<32x96xbf16>
    %166 = vector.extract_strided_slice %164 {offsets = [0, 128], sizes = [32, 32], strides = [1, 1]} : vector<32x384xbf16> to vector<32x32xbf16>
    %167 = vector.extract_strided_slice %164 {offsets = [0, 256], sizes = [32, 64], strides = [1, 1]} : vector<32x384xbf16> to vector<32x64xbf16>
    %c1_33 = arith.constant 1 : index
    %c0_34 = arith.constant 0 : index
    %c0_35 = arith.constant 0 : index
    %168 = vector.load %arg2[%c1_33, %c0_34, %c0_35] : memref<2x64x32xbf16, #tpu.memory_space<vmem>>, vector<1x64x32xbf16>
    %169 = vector.shape_cast %168 : vector<1x64x32xbf16> to vector<64x32xbf16>
    %170 = vector.extract_strided_slice %1 {offsets = [4, 0], sizes = [1, 32], strides = [1, 1]} : vector<9x64xf32> to vector<1x32xf32>
    %171 = vector.extract_strided_slice %1 {offsets = [4, 32], sizes = [1, 32], strides = [1, 1]} : vector<9x64xf32> to vector<1x32xf32>
    %172 = vector.extract_strided_slice %1 {offsets = [5, 0], sizes = [1, 32], strides = [1, 1]} : vector<9x64xf32> to vector<1x32xf32>
    %173 = vector.extract_strided_slice %1 {offsets = [5, 32], sizes = [1, 32], strides = [1, 1]} : vector<9x64xf32> to vector<1x32xf32>
    %174 = vector.extract_strided_slice %1 {offsets = [6, 0], sizes = [1, 32], strides = [1, 1]} : vector<9x64xf32> to vector<1x32xf32>
    %175 = vector.extract_strided_slice %1 {offsets = [6, 32], sizes = [1, 32], strides = [1, 1]} : vector<9x64xf32> to vector<1x32xf32>
    %176 = vector.extract_strided_slice %1 {offsets = [7, 0], sizes = [1, 64], strides = [1, 1]} : vector<9x64xf32> to vector<1x64xf32>
    %cst_36 = arith.constant dense<0.000000e+00> : vector<16xf32>
    %177 = vector.multi_reduction <add>, %162, %cst_36 [1] : vector<16x32xf32> to vector<16xf32>
    %178 = vector.shape_cast %177 : vector<16xf32> to vector<16x1xf32>
    %cst_37 = arith.constant 3.200000e+01 : f32
    %179 = vector.broadcast %cst_37 : f32 to vector<16x1xf32>
    %180 = arith.divf %178, %179 : vector<16x1xf32>
    %181 = arith.mulf %162, %162 : vector<16x32xf32>
    %cst_38 = arith.constant dense<0.000000e+00> : vector<16xf32>
    %182 = vector.multi_reduction <add>, %181, %cst_38 [1] : vector<16x32xf32> to vector<16xf32>
    %183 = vector.shape_cast %182 : vector<16xf32> to vector<16x1xf32>
    %cst_39 = arith.constant 3.200000e+01 : f32
    %184 = vector.broadcast %cst_39 : f32 to vector<16x1xf32>
    %185 = arith.divf %183, %184 : vector<16x1xf32>
    %186 = arith.mulf %180, %180 : vector<16x1xf32>
    %187 = arith.subf %185, %186 : vector<16x1xf32>
    %188 = vector.broadcast %180 : vector<16x1xf32> to vector<16x32xf32>
    %189 = arith.subf %162, %188 : vector<16x32xf32>
    %cst_40 = arith.constant 9.99999974E-6 : f32
    %190 = vector.broadcast %cst_40 : f32 to vector<16x1xf32>
    %191 = arith.addf %187, %190 : vector<16x1xf32>
    %192 = math.rsqrt %191 : vector<16x1xf32>
    %193 = vector.broadcast %192 : vector<16x1xf32> to vector<16x32xf32>
    %194 = arith.mulf %189, %193 : vector<16x32xf32>
    %195 = vector.broadcast %170 : vector<1x32xf32> to vector<16x32xf32>
    %196 = arith.mulf %194, %195 : vector<16x32xf32>
    %197 = vector.broadcast %171 : vector<1x32xf32> to vector<16x32xf32>
    %198 = arith.addf %196, %197 : vector<16x32xf32>
    %199 = arith.truncf %198 : vector<16x32xf32> to vector<16x32xbf16>
    %cst_41 = arith.constant dense<0.000000e+00> : vector<16x96xf32>
    %200 = tpu.matmul %199, %165, %cst_41 {dimension_numbers = #tpu.dot_dimension_numbers<[1], [0], [0], [1], [0, 0, 1, 1], [], []>} : vector<16x32xbf16>, vector<32x96xbf16>, vector<16x96xf32> -> vector<16x96xf32>
    %201 = vector.extract_strided_slice %200 {offsets = [0, 0], sizes = [16, 32], strides = [1, 1]} : vector<16x96xf32> to vector<16x32xf32>
    %202 = vector.extract_strided_slice %201 {offsets = [0, 0], sizes = [16, 8], strides = [1, 1]} : vector<16x32xf32> to vector<16x8xf32>
    %203 = vector.shape_cast %202 : vector<16x8xf32> to vector<2x8x8xf32>
    %204 = vector.extract_strided_slice %201 {offsets = [0, 8], sizes = [16, 8], strides = [1, 1]} : vector<16x32xf32> to vector<16x8xf32>
    %205 = vector.shape_cast %204 : vector<16x8xf32> to vector<2x8x8xf32>
    %206 = vector.extract_strided_slice %201 {offsets = [0, 16], sizes = [16, 8], strides = [1, 1]} : vector<16x32xf32> to vector<16x8xf32>
    %207 = vector.shape_cast %206 : vector<16x8xf32> to vector<2x8x8xf32>
    %208 = vector.extract_strided_slice %201 {offsets = [0, 24], sizes = [16, 8], strides = [1, 1]} : vector<16x32xf32> to vector<16x8xf32>
    %209 = vector.shape_cast %208 : vector<16x8xf32> to vector<2x8x8xf32>
    %210 = vector.shape_cast %203 : vector<2x8x8xf32> to vector<2x1x8x8xf32>
    %211 = vector.shape_cast %205 : vector<2x8x8xf32> to vector<2x1x8x8xf32>
    %212 = vector.shape_cast %207 : vector<2x8x8xf32> to vector<2x1x8x8xf32>
    %213 = vector.shape_cast %209 : vector<2x8x8xf32> to vector<2x1x8x8xf32>
    %214 = tpu.concatenate %210, %211, %212, %213 in 1 : vector<2x1x8x8xf32>, vector<2x1x8x8xf32>, vector<2x1x8x8xf32>, vector<2x1x8x8xf32> -> vector<2x4x8x8xf32>
    %215 = vector.shape_cast %214 : vector<2x4x8x8xf32> to vector<8x8x8xf32>
    %216 = arith.truncf %215 : vector<8x8x8xf32> to vector<8x8x8xbf16>
    %217 = vector.extract_strided_slice %200 {offsets = [0, 32], sizes = [16, 32], strides = [1, 1]} : vector<16x96xf32> to vector<16x32xf32>
    %218 = vector.extract_strided_slice %217 {offsets = [0, 0], sizes = [16, 8], strides = [1, 1]} : vector<16x32xf32> to vector<16x8xf32>
    %219 = vector.shape_cast %218 : vector<16x8xf32> to vector<2x8x8xf32>
    %220 = vector.extract_strided_slice %217 {offsets = [0, 8], sizes = [16, 8], strides = [1, 1]} : vector<16x32xf32> to vector<16x8xf32>
    %221 = vector.shape_cast %220 : vector<16x8xf32> to vector<2x8x8xf32>
    %222 = vector.extract_strided_slice %217 {offsets = [0, 16], sizes = [16, 8], strides = [1, 1]} : vector<16x32xf32> to vector<16x8xf32>
    %223 = vector.shape_cast %222 : vector<16x8xf32> to vector<2x8x8xf32>
    %224 = vector.extract_strided_slice %217 {offsets = [0, 24], sizes = [16, 8], strides = [1, 1]} : vector<16x32xf32> to vector<16x8xf32>
    %225 = vector.shape_cast %224 : vector<16x8xf32> to vector<2x8x8xf32>
    %226 = vector.shape_cast %219 : vector<2x8x8xf32> to vector<2x1x8x8xf32>
    %227 = vector.shape_cast %221 : vector<2x8x8xf32> to vector<2x1x8x8xf32>
    %228 = vector.shape_cast %223 : vector<2x8x8xf32> to vector<2x1x8x8xf32>
    %229 = vector.shape_cast %225 : vector<2x8x8xf32> to vector<2x1x8x8xf32>
    %230 = tpu.concatenate %226, %227, %228, %229 in 1 : vector<2x1x8x8xf32>, vector<2x1x8x8xf32>, vector<2x1x8x8xf32>, vector<2x1x8x8xf32> -> vector<2x4x8x8xf32>
    %231 = vector.shape_cast %230 : vector<2x4x8x8xf32> to vector<8x8x8xf32>
    %232 = arith.truncf %231 : vector<8x8x8xf32> to vector<8x8x8xbf16>
    %233 = vector.extract_strided_slice %200 {offsets = [0, 64], sizes = [16, 32], strides = [1, 1]} : vector<16x96xf32> to vector<16x32xf32>
    %234 = vector.extract_strided_slice %233 {offsets = [0, 0], sizes = [16, 8], strides = [1, 1]} : vector<16x32xf32> to vector<16x8xf32>
    %235 = vector.shape_cast %234 : vector<16x8xf32> to vector<2x8x8xf32>
    %236 = vector.extract_strided_slice %233 {offsets = [0, 8], sizes = [16, 8], strides = [1, 1]} : vector<16x32xf32> to vector<16x8xf32>
    %237 = vector.shape_cast %236 : vector<16x8xf32> to vector<2x8x8xf32>
    %238 = vector.extract_strided_slice %233 {offsets = [0, 16], sizes = [16, 8], strides = [1, 1]} : vector<16x32xf32> to vector<16x8xf32>
    %239 = vector.shape_cast %238 : vector<16x8xf32> to vector<2x8x8xf32>
    %240 = vector.extract_strided_slice %233 {offsets = [0, 24], sizes = [16, 8], strides = [1, 1]} : vector<16x32xf32> to vector<16x8xf32>
    %241 = vector.shape_cast %240 : vector<16x8xf32> to vector<2x8x8xf32>
    %242 = vector.shape_cast %235 : vector<2x8x8xf32> to vector<2x1x8x8xf32>
    %243 = vector.shape_cast %237 : vector<2x8x8xf32> to vector<2x1x8x8xf32>
    %244 = vector.shape_cast %239 : vector<2x8x8xf32> to vector<2x1x8x8xf32>
    %245 = vector.shape_cast %241 : vector<2x8x8xf32> to vector<2x1x8x8xf32>
    %246 = tpu.concatenate %242, %243, %244, %245 in 1 : vector<2x1x8x8xf32>, vector<2x1x8x8xf32>, vector<2x1x8x8xf32>, vector<2x1x8x8xf32> -> vector<2x4x8x8xf32>
    %247 = vector.shape_cast %246 : vector<2x4x8x8xf32> to vector<8x8x8xf32>
    %248 = arith.truncf %247 : vector<8x8x8xf32> to vector<8x8x8xbf16>
    "tpu.trace_start"() <{level = 10 : i32, message = "nqd,nkd->nqk"}> : () -> ()
    %cst_42 = arith.constant dense<0.000000e+00> : vector<8x8x8xf32>
    %249 = tpu.matmul %216, %232, %cst_42 {dimension_numbers = #tpu.dot_dimension_numbers<[2], [2], [1], [1], [0, 0, 0, 1, 1, 1], [0], [0]>} : vector<8x8x8xbf16>, vector<8x8x8xbf16>, vector<8x8x8xf32> -> vector<8x8x8xf32>
    "tpu.trace_stop"() : () -> ()
    %cst_43 = arith.constant 0.353553385 : f32
    %250 = vector.broadcast %cst_43 : f32 to vector<8x8x8xf32>
    %251 = arith.mulf %249, %250 : vector<8x8x8xf32>
    %cst_44 = arith.constant dense<0xFF800000> : vector<8x8xf32>
    %252 = vector.multi_reduction <maximumf>, %251, %cst_44 [2] : vector<8x8x8xf32> to vector<8x8xf32>
    %253 = vector.shape_cast %252 : vector<8x8xf32> to vector<8x8x1xf32>
    %254 = vector.broadcast %253 : vector<8x8x1xf32> to vector<8x8x8xf32>
    %255 = arith.subf %251, %254 : vector<8x8x8xf32>
    %256 = math.exp %255 : vector<8x8x8xf32>
    %cst_45 = arith.constant dense<0.000000e+00> : vector<8x8xf32>
    %257 = vector.multi_reduction <add>, %256, %cst_45 [2] : vector<8x8x8xf32> to vector<8x8xf32>
    %258 = vector.shape_cast %257 : vector<8x8xf32> to vector<8x8x1xf32>
    %259 = tpu.reciprocal %258 {approx = true} : vector<8x8x1xf32> -> vector<8x8x1xf32>
    %260 = vector.broadcast %259 : vector<8x8x1xf32> to vector<8x8x8xf32>
    %261 = arith.mulf %256, %260 : vector<8x8x8xf32>
    %262 = arith.truncf %261 : vector<8x8x8xf32> to vector<8x8x8xbf16>
    "tpu.trace_start"() <{level = 10 : i32, message = "nqk,nkd->nqd"}> : () -> ()
    %cst_46 = arith.constant dense<0.000000e+00> : vector<8x8x8xf32>
    %263 = tpu.matmul %262, %248, %cst_46 {dimension_numbers = #tpu.dot_dimension_numbers<[2], [1], [1], [2], [0, 0, 0, 1, 1, 2], [0], [0]>} : vector<8x8x8xbf16>, vector<8x8x8xbf16>, vector<8x8x8xf32> -> vector<8x8x8xf32>
    "tpu.trace_stop"() : () -> ()
    %264 = vector.shape_cast %263 : vector<8x8x8xf32> to vector<2x4x8x8xf32>
    %265 = vector.extract_strided_slice %264 {offsets = [0, 0, 0, 0], sizes = [2, 1, 8, 8], strides = [1, 1, 1, 1]} : vector<2x4x8x8xf32> to vector<2x1x8x8xf32>
    %266 = vector.shape_cast %265 : vector<2x1x8x8xf32> to vector<2x8x8xf32>
    %267 = vector.extract_strided_slice %264 {offsets = [0, 1, 0, 0], sizes = [2, 1, 8, 8], strides = [1, 1, 1, 1]} : vector<2x4x8x8xf32> to vector<2x1x8x8xf32>
    %268 = vector.shape_cast %267 : vector<2x1x8x8xf32> to vector<2x8x8xf32>
    %269 = vector.extract_strided_slice %264 {offsets = [0, 2, 0, 0], sizes = [2, 1, 8, 8], strides = [1, 1, 1, 1]} : vector<2x4x8x8xf32> to vector<2x1x8x8xf32>
    %270 = vector.shape_cast %269 : vector<2x1x8x8xf32> to vector<2x8x8xf32>
    %271 = vector.extract_strided_slice %264 {offsets = [0, 3, 0, 0], sizes = [2, 1, 8, 8], strides = [1, 1, 1, 1]} : vector<2x4x8x8xf32> to vector<2x1x8x8xf32>
    %272 = vector.shape_cast %271 : vector<2x1x8x8xf32> to vector<2x8x8xf32>
    %273 = tpu.concatenate %266, %268, %270, %272 in 2 : vector<2x8x8xf32>, vector<2x8x8xf32>, vector<2x8x8xf32>, vector<2x8x8xf32> -> vector<2x8x32xf32>
    %274 = vector.shape_cast %273 : vector<2x8x32xf32> to vector<16x32xf32>
    %275 = arith.truncf %274 : vector<16x32xf32> to vector<16x32xbf16>
    %cst_47 = arith.constant dense<0.000000e+00> : vector<16x32xf32>
    %276 = tpu.matmul %275, %166, %cst_47 {dimension_numbers = #tpu.dot_dimension_numbers<[1], [0], [0], [1], [0, 0, 1, 1], [], []>} : vector<16x32xbf16>, vector<32x32xbf16>, vector<16x32xf32> -> vector<16x32xf32>
    %277 = vector.broadcast %174 : vector<1x32xf32> to vector<16x32xf32>
    %278 = arith.addf %276, %277 : vector<16x32xf32>
    %279 = arith.addf %162, %278 : vector<16x32xf32>
    %cst_48 = arith.constant dense<0.000000e+00> : vector<16xf32>
    %280 = vector.multi_reduction <add>, %279, %cst_48 [1] : vector<16x32xf32> to vector<16xf32>
    %281 = vector.shape_cast %280 : vector<16xf32> to vector<16x1xf32>
    %cst_49 = arith.constant 3.200000e+01 : f32
    %282 = vector.broadcast %cst_49 : f32 to vector<16x1xf32>
    %283 = arith.divf %281, %282 : vector<16x1xf32>
    %284 = arith.mulf %279, %279 : vector<16x32xf32>
    %cst_50 = arith.constant dense<0.000000e+00> : vector<16xf32>
    %285 = vector.multi_reduction <add>, %284, %cst_50 [1] : vector<16x32xf32> to vector<16xf32>
    %286 = vector.shape_cast %285 : vector<16xf32> to vector<16x1xf32>
    %cst_51 = arith.constant 3.200000e+01 : f32
    %287 = vector.broadcast %cst_51 : f32 to vector<16x1xf32>
    %288 = arith.divf %286, %287 : vector<16x1xf32>
    %289 = arith.mulf %283, %283 : vector<16x1xf32>
    %290 = arith.subf %288, %289 : vector<16x1xf32>
    %291 = vector.broadcast %283 : vector<16x1xf32> to vector<16x32xf32>
    %292 = arith.subf %279, %291 : vector<16x32xf32>
    %cst_52 = arith.constant 9.99999974E-6 : f32
    %293 = vector.broadcast %cst_52 : f32 to vector<16x1xf32>
    %294 = arith.addf %290, %293 : vector<16x1xf32>
    %295 = math.rsqrt %294 : vector<16x1xf32>
    %296 = vector.broadcast %295 : vector<16x1xf32> to vector<16x32xf32>
    %297 = arith.mulf %292, %296 : vector<16x32xf32>
    %298 = vector.broadcast %172 : vector<1x32xf32> to vector<16x32xf32>
    %299 = arith.mulf %297, %298 : vector<16x32xf32>
    %300 = vector.broadcast %173 : vector<1x32xf32> to vector<16x32xf32>
    %301 = arith.addf %299, %300 : vector<16x32xf32>
    %302 = arith.truncf %301 : vector<16x32xf32> to vector<16x32xbf16>
    %cst_53 = arith.constant dense<0.000000e+00> : vector<16x64xf32>
    %303 = tpu.matmul %302, %167, %cst_53 {dimension_numbers = #tpu.dot_dimension_numbers<[1], [0], [0], [1], [0, 0, 1, 1], [], []>} : vector<16x32xbf16>, vector<32x64xbf16>, vector<16x64xf32> -> vector<16x64xf32>
    %304 = vector.broadcast %176 : vector<1x64xf32> to vector<16x64xf32>
    %305 = arith.addf %303, %304 : vector<16x64xf32>
    %306 = arith.mulf %305, %305 : vector<16x64xf32>
    %307 = arith.mulf %305, %306 : vector<16x64xf32>
    %cst_54 = arith.constant 4.471500e-02 : f32
    %308 = vector.broadcast %cst_54 : f32 to vector<16x64xf32>
    %309 = arith.mulf %308, %307 : vector<16x64xf32>
    %310 = arith.addf %305, %309 : vector<16x64xf32>
    %cst_55 = arith.constant 0.797884583 : f32
    %311 = vector.broadcast %cst_55 : f32 to vector<16x64xf32>
    %312 = arith.mulf %311, %310 : vector<16x64xf32>
    %313 = math.tanh %312 : vector<16x64xf32>
    %cst_56 = arith.constant 1.000000e+00 : f32
    %314 = vector.broadcast %cst_56 : f32 to vector<16x64xf32>
    %315 = arith.addf %314, %313 : vector<16x64xf32>
    %cst_57 = arith.constant 5.000000e-01 : f32
    %316 = vector.broadcast %cst_57 : f32 to vector<16x64xf32>
    %317 = arith.mulf %316, %315 : vector<16x64xf32>
    %318 = arith.mulf %305, %317 : vector<16x64xf32>
    %319 = arith.truncf %318 : vector<16x64xf32> to vector<16x64xbf16>
    %cst_58 = arith.constant dense<0.000000e+00> : vector<16x32xf32>
    %320 = tpu.matmul %319, %169, %cst_58 {dimension_numbers = #tpu.dot_dimension_numbers<[1], [0], [0], [1], [0, 0, 1, 1], [], []>} : vector<16x64xbf16>, vector<64x32xbf16>, vector<16x32xf32> -> vector<16x32xf32>
    %321 = vector.broadcast %175 : vector<1x32xf32> to vector<16x32xf32>
    %322 = arith.addf %320, %321 : vector<16x32xf32>
    %323 = arith.addf %279, %322 : vector<16x32xf32>
    %324 = vector.extract_strided_slice %1 {offsets = [8, 0], sizes = [1, 32], strides = [1, 1]} : vector<9x64xf32> to vector<1x32xf32>
    %325 = vector.extract_strided_slice %1 {offsets = [8, 32], sizes = [1, 32], strides = [1, 1]} : vector<9x64xf32> to vector<1x32xf32>
    %cst_59 = arith.constant dense<0.000000e+00> : vector<16xf32>
    %326 = vector.multi_reduction <add>, %323, %cst_59 [1] : vector<16x32xf32> to vector<16xf32>
    %327 = vector.shape_cast %326 : vector<16xf32> to vector<16x1xf32>
    %cst_60 = arith.constant 3.200000e+01 : f32
    %328 = vector.broadcast %cst_60 : f32 to vector<16x1xf32>
    %329 = arith.divf %327, %328 : vector<16x1xf32>
    %330 = arith.mulf %323, %323 : vector<16x32xf32>
    %cst_61 = arith.constant dense<0.000000e+00> : vector<16xf32>
    %331 = vector.multi_reduction <add>, %330, %cst_61 [1] : vector<16x32xf32> to vector<16xf32>
    %332 = vector.shape_cast %331 : vector<16xf32> to vector<16x1xf32>
    %cst_62 = arith.constant 3.200000e+01 : f32
    %333 = vector.broadcast %cst_62 : f32 to vector<16x1xf32>
    %334 = arith.divf %332, %333 : vector<16x1xf32>
    %335 = arith.mulf %329, %329 : vector<16x1xf32>
    %336 = arith.subf %334, %335 : vector<16x1xf32>
    %337 = vector.broadcast %329 : vector<16x1xf32> to vector<16x32xf32>
    %338 = arith.subf %323, %337 : vector<16x32xf32>
    %cst_63 = arith.constant 9.99999974E-6 : f32
    %339 = vector.broadcast %cst_63 : f32 to vector<16x1xf32>
    %340 = arith.addf %336, %339 : vector<16x1xf32>
    %341 = math.rsqrt %340 : vector<16x1xf32>
    %342 = vector.broadcast %341 : vector<16x1xf32> to vector<16x32xf32>
    %343 = arith.mulf %338, %342 : vector<16x32xf32>
    %344 = vector.broadcast %324 : vector<1x32xf32> to vector<16x32xf32>
    %345 = arith.mulf %343, %344 : vector<16x32xf32>
    %346 = vector.broadcast %325 : vector<1x32xf32> to vector<16x32xf32>
    %347 = arith.addf %345, %346 : vector<16x32xf32>
    %c0_64 = arith.constant 0 : index
    %c0_65 = arith.constant 0 : index
    %348 = vector.load %arg4[%c0_64, %c0_65] : memref<16x32xf32, #tpu.memory_space<vmem>>, vector<16x32xf32>
    tpu.vector_store %arg4[%c0_64, %c0_65], %347 {strides = array<i32>} : memref<16x32xf32, #tpu.memory_space<vmem>>, vector<16x32xf32>,
    return
  }
}

</mosaic_0001>

<llo_original>
// kernel: transformer_forward.1
$region0: #{transformer_forward.1}
  #allocation0 [shape = 'u32[]', space=smem, size = 0x4, offset = 0x4, fixed_abs, tag = 'smem constant byte address 0x4 - core index']
  #allocation1 [shape = 'u32[72,128]{1,0:T(1,128)}', space=vmem, size = 0x9000, scoped, tag = 'internal scratch']
  %s0 = inlined_call_operand.vmem [shape: f32[16,32], index: 0, kind: input, shape index: {}]
  %s1 = inlined_call_operand.vmem [shape: bf16[2,32,384], index: 1, kind: input, shape index: {}]
  %s2 = inlined_call_operand.vmem [shape: bf16[2,64,32], index: 2, kind: input, shape index: {}]
  %s3 = inlined_call_operand.vmem [shape: f32[9,64], index: 3, kind: input, shape index: {}]
  %s4 = inlined_call_operand.hbm [shape: f32[16,32], index: 4, kind: output, shape index: {}]
  %s5 = sld [smem:[#allocation0]]
  $region26: #{transformer_forward.1} parent=0
    _
  %s7 = ssub.s32 1, %s5
  %s8 = scalar_select 0, %s7, %s5
  $region1: #{transformer_forward.1} parent=0
    #allocation2 [shape = 'u8[8192]{0}', space=vmem, size = 0x2000, scoped, tag = 'output window, operand 0, single buffered']
    #allocation3 [shape = 's32[1]{0}', space=sflag, size = 0x4, scoped, tag = 'scoped memory for transformer_forward.1']
    %9 = vsyncpa [#allocation3], 0
    // Predicated region
    $region2: #{transformer_forward.1} parent=1 // pred_check
      _
    $region3: #{transformer_forward.1} parent=1 // pred_check_branch
      %11 = sbr.rel (0) target = $region5
    $region4: #{transformer_forward.1} parent=1 // pred_region
      _
    $region5: #{transformer_forward.1} parent=1 // pred_fallthru
      _
    // Predicated region
    $region6: #{transformer_forward.1} parent=1 // pred_check
      _
    $region7: #{transformer_forward.1} parent=1 // pred_check_branch
      %13 = sbr.rel (0) target = $region9
    $region8: #{transformer_forward.1} parent=1 // pred_region
      _
    $region9: #{transformer_forward.1} parent=1 // pred_fallthru
      _
    // Predicated region
    $region10: #{transformer_forward.1} parent=1 // pred_check
      _
    $region11: #{transformer_forward.1} parent=1 // pred_check_branch
      %15 = sbr.rel (0) target = $region13
    $region12: #{transformer_forward.1} parent=1 // pred_region
      _
    $region13: #{transformer_forward.1} parent=1 // pred_fallthru
      _
    // Predicated region
    $region14: #{transformer_forward.1} parent=1 // pred_check
      _
    $region15: #{transformer_forward.1} parent=1 // pred_check_branch
      %17 = sbr.rel (0) target = $region17
    $region16: #{transformer_forward.1} parent=1 // pred_region
      _
    $region17: #{transformer_forward.1} parent=1 // pred_fallthru
      _
    %v19 = vld [vmem:[%s0] sm:$0xff]
    %v20 = vld [vmem:[%s0 + $0x8] sm:$0xff]
    %v21 = vld [vmem:[%s3] sm:$0xff]
    %v22 = vld [vmem:[%s3 + $0x8] sm:$0x1]
    %v23 = vld [vmem:[%s1] sm:$0xff]
    %v24 = vld [vmem:[%s1 + $0x8] sm:$0xf]
    %v25 = vld [vmem:[%s1 + $0xc] sm:$0xff]
    %v26 = vld [vmem:[%s1 + $0x14] sm:$0xf]
    %v27 = vld [vmem:[%s1 + $0x18] sm:$0xff]
    %v28 = vld [vmem:[%s1 + $0x20] sm:$0xf]
    %v29 = vld [vmem:[%s1 + $0x24] sm:$0xff]
    %v30 = vld [vmem:[%s1 + $0x2c] sm:$0xf]
    %v31 = vld [vmem:[%s2] sm:$0xf]
    %v32 = vld [vmem:[%s2 + $0x4] sm:$0xf]
    %v33 = vld [vmem:[%s2 + $0x8] sm:$0xf]
    %v34 = vld [vmem:[%s2 + $0xc] sm:$0xf]
    %v35 = vld [vmem:[%s2 + $0x10] sm:$0xf]
    %v36 = vld [vmem:[%s2 + $0x14] sm:$0xf]
    %v37 = vld [vmem:[%s2 + $0x18] sm:$0xf]
    %v38 = vld [vmem:[%s2 + $0x1c] sm:$0xf]
    %vm39 = vcmask 261120
    %v40 = vsel %vm39, %v19, 0.0
    %41 = vadd.xlane.f32.xlu0 %v40
    %v42 = vpop.xlane.xlu0 %41
    %v43 = vsel %vm39, %v20, 0.0
    %44 = vadd.xlane.f32.xlu0 %v43
    %v45 = vpop.xlane.xlu0 %44
    %v46 = vrcp.pop 32.0
    %v47 = vmul.f32 32.0, %v46
    %v48 = vsub.f32 1.0, %v47
    %v49 = vmul.f32 %v46, %v48
    %v50 = vadd.f32 %v46, %v49
    %vm51 = vweird.f32 %v46
    %v52 = vsel %vm51, %v46, %v50
    %v53 = vmul.f32 %v42, %v52
    %v54 = vmul.f32 %v45, %v52
    %v55 = vmul.f32 %v19, %v19
    %v56 = vmul.f32 %v20, %v20
    %v57 = vsel %vm39, %v55, 0.0
    %58 = vadd.xlane.f32.xlu0 %v57
    %v59 = vpop.xlane.xlu0 %58
    %v60 = vsel %vm39, %v56, 0.0
    %61 = vadd.xlane.f32.xlu0 %v60
    %v62 = vpop.xlane.xlu0 %61
    %v63 = vmul.f32 %v59, %v52
    %v64 = vmul.f32 %v62, %v52
    %v65 = vmul.f32 %v53, %v53
    %v66 = vmul.f32 %v54, %v54
    %v67 = vsub.f32 %v63, %v65
    %v68 = vsub.f32 %v64, %v66
    %v69 = vsub.f32 %v19, %v53
    %v70 = vsub.f32 %v20, %v54
    %v71 = vadd.f32 %v67, 1e-05
    %v72 = vadd.f32 %v68, 1e-05
    %v73 = vrsqrt.pop %v71
    %v74 = vmul.f32 %v73, %v71
    %v75 = vmul.f32 %v74, %v73
    %v76 = vmul.f32 0.5, %v75
    %v77 = vsub.f32 1.5, %v76
    %v78 = vmul.f32 %v73, %v77
    %vm79 = vweird.f32 %v71
    %vm80 = vweird.f32 %v73
    %vm81 = vmor %vm79, %vm80
    %v82 = vsel %vm81, %v73, %v78
    %v83 = vrsqrt.pop %v72
    %v84 = vmul.f32 %v83, %v72
    %v85 = vmul.f32 %v84, %v83
    %v86 = vmul.f32 0.5, %v85
    %v87 = vsub.f32 1.5, %v86
    %v88 = vmul.f32 %v83, %v87
    %vm89 = vweird.f32 %v72
    %vm90 = vweird.f32 %v83
    %vm91 = vmor %vm89, %vm90
    %v92 = vsel %vm91, %v83, %v88
    %v93 = vmul.f32 %v69, %v82
    %v94 = vmul.f32 %v70, %v92
    %v95 = vperm.slane %v21, 0
    %v96 = vmul.f32 %v93, %v95
    %v97 = vmul.f32 %v94, %v95
    %99 = vrot.lane.b32.xlu0 %v95, 96
    %v100 = vpop.permute.xlu0 %99
    %v102 = vadd.f32 %v96, %v100
    %v103 = vadd.f32 %v97, %v100
    %v104 = vpack.c.bf16 %v103, %v102
    %v109 = vunpack.c.l.b16 %v23
    %v110 = vunpack.c.l.b16 %v25
    %v111 = vunpack.c.l.b16 %v27
    %v112 = vunpack.c.l.b16 %v29
    %v113 = vpack.c.b16 %v110, %v109
    %v114 = vpack.c.b16 %v112, %v111
    %v118 = vsel %vm39, %v104, 0
    %120 = vmatpush.bf16.msra.mxu0 0
    %121 = vmatpush.bf16.msra.mxu0 0
    %122 = vmatpush.bf16.msra.mxu0 0
    %123 = vmatpush.bf16.msra.mxu0 0
    %124 = vmatpush.bf16.msra.mxu0 0
    %125 = vmatpush.bf16.msra.mxu0 0
    %126 = vmatpush.bf16.msra.mxu0 %v114
    %127 = vmatpush.bf16.msra.mxu0 %v113
    %128 = vmatmul.bf16.gmra.mxu0 %v118
    %v129 = vpop.f32.mrf.mxu0
    %v130 = vadd.f32 0.0, %v129
    %v131 = vpop.f32.mrf.mxu0
    %v132 = vadd.f32 0.0, %v131
    %133 = vdwg.mxu0
    %136 = vrot.lane.b32.xlu0 %v130, 120
    %v137 = vpop.permute.xlu0 %136
    %138 = vrot.lane.b32.xlu0 %v132, 120
    %v139 = vpop.permute.xlu0 %138
    %142 = vrot.lane.b32.xlu0 %v130, 112
    %v143 = vpop.permute.xlu0 %142
    %144 = vrot.lane.b32.xlu0 %v132, 112
    %v145 = vpop.permute.xlu0 %144
    %148 = vrot.lane.b32.xlu0 %v130, 104
    %v149 = vpop.permute.xlu0 %148
    %150 = vrot.lane.b32.xlu0 %v132, 104
    %v151 = vpop.permute.xlu0 %150
    %v154 = vpack.c.bf16 %v130, %v130
    %v155 = vpack.c.bf16 %v137, %v137
    %v156 = vpack.c.bf16 %v143, %v143
    %v157 = vpack.c.bf16 %v149, %v149
    %v158 = vpack.c.bf16 %v132, %v132
    %v159 = vpack.c.bf16 %v139, %v139
    %v160 = vpack.c.bf16 %v145, %v145
    %v161 = vpack.c.bf16 %v151, %v151
    %v163 = vunpack.c.l.b16 %v154
    %v164 = vpack.c.b16 %v163, %v163
    %165 = vrot.lane.b32.xlu0 %v164, 96
    %v166 = vpop.permute.xlu0 %165
    %vm167 = vcmask 64512
    %v169 = vsel %vm167, %v154, 0
    %v172 = vsel %vm167, %v166, 0
    %174 = vmatpush.bf16.xpose.msra.mxu0 0
    %175 = vmatpush.bf16.xpose.msra.mxu0 0
    %176 = vmatpush.bf16.xpose.msra.mxu0 0
    %177 = vmatpush.bf16.xpose.msra.mxu0 0
    %178 = vmatpush.bf16.xpose.msra.mxu0 0
    %179 = vmatpush.bf16.xpose.msra.mxu0 0
    %180 = vmatpush.bf16.xpose.msra.mxu0 0
    %181 = vmatpush.bf16.xpose.msra.mxu0 %v172
    %182 = vmatmul.bf16.gmra.mxu0 %v169
    %v183 = vpop.f32.mrf.mxu0
    %v184 = vadd.f32 0.0, %v183
    %v185 = vpop.f32.mrf.mxu0
    %186 = vdwg.mxu0
    %v188 = vunpack.c.l.b16 %v155
    %v189 = vpack.c.b16 %v188, %v188
    %190 = vrot.lane.b32.xlu0 %v189, 96
    %v191 = vpop.permute.xlu0 %190
    %v193 = vsel %vm167, %v155, 0
    %v196 = vsel %vm167, %v191, 0
    %198 = vmatpush.bf16.xpose.msra.mxu0 0
    %199 = vmatpush.bf16.xpose.msra.mxu0 0
    %200 = vmatpush.bf16.xpose.msra.mxu0 0
    %201 = vmatpush.bf16.xpose.msra.mxu0 0
    %202 = vmatpush.bf16.xpose.msra.mxu0 0
    %203 = vmatpush.bf16.xpose.msra.mxu0 0
    %204 = vmatpush.bf16.xpose.msra.mxu0 0
    %205 = vmatpush.bf16.xpose.msra.mxu0 %v196
    %206 = vmatmul.bf16.gmra.mxu0 %v193
    %v207 = vpop.f32.mrf.mxu0
    %v208 = vadd.f32 0.0, %v207
    %v209 = vpop.f32.mrf.mxu0
    %210 = vdwg.mxu0
    %v212 = vunpack.c.l.b16 %v156
    %v213 = vpack.c.b16 %v212, %v212
    %214 = vrot.lane.b32.xlu0 %v213, 96
    %v215 = vpop.permute.xlu0 %214
    %v217 = vsel %vm167, %v156, 0
    %v220 = vsel %vm167, %v215, 0
    %222 = vmatpush.bf16.xpose.msra.mxu0 0
    %223 = vmatpush.bf16.xpose.msra.mxu0 0
    %224 = vmatpush.bf16.xpose.msra.mxu0 0
    %225 = vmatpush.bf16.xpose.msra.mxu0 0
    %226 = vmatpush.bf16.xpose.msra.mxu0 0
    %227 = vmatpush.bf16.xpose.msra.mxu0 0
    %228 = vmatpush.bf16.xpose.msra.mxu0 0
    %229 = vmatpush.bf16.xpose.msra.mxu0 %v220
    %230 = vmatmul.bf16.gmra.mxu0 %v217
    %v231 = vpop.f32.mrf.mxu0
    %v232 = vadd.f32 0.0, %v231
    %v233 = vpop.f32.mrf.mxu0
    %234 = vdwg.mxu0
    %v236 = vunpack.c.l.b16 %v157
    %v237 = vpack.c.b16 %v236, %v236
    %238 = vrot.lane.b32.xlu0 %v237, 96
    %v239 = vpop.permute.xlu0 %238
    %v241 = vsel %vm167, %v157, 0
    %v244 = vsel %vm167, %v239, 0
    %246 = vmatpush.bf16.xpose.msra.mxu0 0
    %247 = vmatpush.bf16.xpose.msra.mxu0 0
    %248 = vmatpush.bf16.xpose.msra.mxu0 0
    %249 = vmatpush.bf16.xpose.msra.mxu0 0
    %250 = vmatpush.bf16.xpose.msra.mxu0 0
    %251 = vmatpush.bf16.xpose.msra.mxu0 0
    %252 = vmatpush.bf16.xpose.msra.mxu0 0
    %253 = vmatpush.bf16.xpose.msra.mxu0 %v244
    %254 = vmatmul.bf16.gmra.mxu0 %v241
    %v255 = vpop.f32.mrf.mxu0
    %v256 = vadd.f32 0.0, %v255
    %v257 = vpop.f32.mrf.mxu0
    %258 = vdwg.mxu0
    %v260 = vunpack.c.l.b16 %v158
    %v261 = vpack.c.b16 %v260, %v260
    %262 = vrot.lane.b32.xlu0 %v261, 96
    %v263 = vpop.permute.xlu0 %262
    %v265 = vsel %vm167, %v158, 0
    %v268 = vsel %vm167, %v263, 0
    %270 = vmatpush.bf16.xpose.msra.mxu0 0
    %271 = vmatpush.bf16.xpose.msra.mxu0 0
    %272 = vmatpush.bf16.xpose.msra.mxu0 0
    %273 = vmatpush.bf16.xpose.msra.mxu0 0
    %274 = vmatpush.bf16.xpose.msra.mxu0 0
    %275 = vmatpush.bf16.xpose.msra.mxu0 0
    %276 = vmatpush.bf16.xpose.msra.mxu0 0
    %277 = vmatpush.bf16.xpose.msra.mxu0 %v268
    %278 = vmatmul.bf16.gmra.mxu0 %v265
    %v279 = vpop.f32.mrf.mxu0
    %v280 = vadd.f32 0.0, %v279
    %v281 = vpop.f32.mrf.mxu0
    %282 = vdwg.mxu0
    %v284 = vunpack.c.l.b16 %v159
    %v285 = vpack.c.b16 %v284, %v284
    %286 = vrot.lane.b32.xlu0 %v285, 96
    %v287 = vpop.permute.xlu0 %286
    %v289 = vsel %vm167, %v159, 0
    %v292 = vsel %vm167, %v287, 0
    %294 = vmatpush.bf16.xpose.msra.mxu0 0
    %295 = vmatpush.bf16.xpose.msra.mxu0 0
    %296 = vmatpush.bf16.xpose.msra.mxu0 0
    %297 = vmatpush.bf16.xpose.msra.mxu0 0
    %298 = vmatpush.bf16.xpose.msra.mxu0 0
    %299 = vmatpush.bf16.xpose.msra.mxu0 0
    %300 = vmatpush.bf16.xpose.msra.mxu0 0
    %301 = vmatpush.bf16.xpose.msra.mxu0 %v292
    %302 = vmatmul.bf16.gmra.mxu0 %v289
    %v303 = vpop.f32.mrf.mxu0
    %v304 = vadd.f32 0.0, %v303
    %v305 = vpop.f32.mrf.mxu0
    %306 = vdwg.mxu0
    %v308 = vunpack.c.l.b16 %v160
    %v309 = vpack.c.b16 %v308, %v308
    %310 = vrot.lane.b32.xlu0 %v309, 96
    %v311 = vpop.permute.xlu0 %310
    %v313 = vsel %vm167, %v160, 0
    %v316 = vsel %vm167, %v311, 0
    %318 = vmatpush.bf16.xpose.msra.mxu0 0
    %319 = vmatpush.bf16.xpose.msra.mxu0 0
    %320 = vmatpush.bf16.xpose.msra.mxu0 0
    %321 = vmatpush.bf16.xpose.msra.mxu0 0
    %322 = vmatpush.bf16.xpose.msra.mxu0 0
    %323 = vmatpush.bf16.xpose.msra.mxu0 0
    %324 = vmatpush.bf16.xpose.msra.mxu0 0
    %325 = vmatpush.bf16.xpose.msra.mxu0 %v316
    %326 = vmatmul.bf16.gmra.mxu0 %v313
    %v327 = vpop.f32.mrf.mxu0
    %v328 = vadd.f32 0.0, %v327
    %v329 = vpop.f32.mrf.mxu0
    %330 = vdwg.mxu0
    %v332 = vunpack.c.l.b16 %v161
    %v333 = vpack.c.b16 %v332, %v332
    %334 = vrot.lane.b32.xlu0 %v333, 96
    %v335 = vpop.permute.xlu0 %334
    %v337 = vsel %vm167, %v161, 0
    %v340 = vsel %vm167, %v335, 0
    %342 = vmatpush.bf16.xpose.msra.mxu0 0
    %343 = vmatpush.bf16.xpose.msra.mxu0 0
    %344 = vmatpush.bf16.xpose.msra.mxu0 0
    %345 = vmatpush.bf16.xpose.msra.mxu0 0
    %346 = vmatpush.bf16.xpose.msra.mxu0 0
    %347 = vmatpush.bf16.xpose.msra.mxu0 0
    %348 = vmatpush.bf16.xpose.msra.mxu0 0
    %349 = vmatpush.bf16.xpose.msra.mxu0 %v340
    %350 = vmatmul.bf16.gmra.mxu0 %v337
    %v351 = vpop.f32.mrf.mxu0
    %v352 = vadd.f32 0.0, %v351
    %v353 = vpop.f32.mrf.mxu0
    %354 = vdwg.mxu0
    %v355 = vmul.f32 %v184, 0.35355338
    %v356 = vmul.f32 %v208, 0.35355338
    %v357 = vmul.f32 %v232, 0.35355338
    %v358 = vmul.f32 %v256, 0.35355338
    %v359 = vmul.f32 %v280, 0.35355338
    %v360 = vmul.f32 %v304, 0.35355338
    %v361 = vmul.f32 %v328, 0.35355338
    %v362 = vmul.f32 %v352, 0.35355338
    %v363 = vsel %vm167, %v355, -inf
    %364 = vmax.xlane.f32.xlu0 %v363
    %v365 = vpop.xlane.xlu0 %364
    %v366 = vsel %vm167, %v356, -inf
    %367 = vmax.xlane.f32.xlu0 %v366
    %v368 = vpop.xlane.xlu0 %367
    %v369 = vsel %vm167, %v357, -inf
    %370 = vmax.xlane.f32.xlu0 %v369
    %v371 = vpop.xlane.xlu0 %370
    %v372 = vsel %vm167, %v358, -inf
    %373 = vmax.xlane.f32.xlu0 %v372
    %v374 = vpop.xlane.xlu0 %373
    %v375 = vsel %vm167, %v359, -inf
    %376 = vmax.xlane.f32.xlu0 %v375
    %v377 = vpop.xlane.xlu0 %376
    %v378 = vsel %vm167, %v360, -inf
    %379 = vmax.xlane.f32.xlu0 %v378
    %v380 = vpop.xlane.xlu0 %379
    %v381 = vsel %vm167, %v361, -inf
    %382 = vmax.xlane.f32.xlu0 %v381
    %v383 = vpop.xlane.xlu0 %382
    %v384 = vsel %vm167, %v362, -inf
    %385 = vmax.xlane.f32.xlu0 %v384
    %v386 = vpop.xlane.xlu0 %385
    %v387 = vsub.f32 %v355, %v365
    %v388 = vsub.f32 %v356, %v368
    %v389 = vsub.f32 %v357, %v371
    %v390 = vsub.f32 %v358, %v374
    %v391 = vsub.f32 %v359, %v377
    %v392 = vsub.f32 %v360, %v380
    %v393 = vsub.f32 %v361, %v383
    %v394 = vsub.f32 %v362, %v386
    %v395 = vmul.f32 %v387, 1.442695
    %v396 = vpow.pop %v395
    %v397 = vmul.f32 %v388, 1.442695
    %v398 = vpow.pop %v397
    %v399 = vmul.f32 %v389, 1.442695
    %v400 = vpow.pop %v399
    %v401 = vmul.f32 %v390, 1.442695
    %v402 = vpow.pop %v401
    %v403 = vmul.f32 %v391, 1.442695
    %v404 = vpow.pop %v403
    %v405 = vmul.f32 %v392, 1.442695
    %v406 = vpow.pop %v405
    %v407 = vmul.f32 %v393, 1.442695
    %v408 = vpow.pop %v407
    %v409 = vmul.f32 %v394, 1.442695
    %v410 = vpow.pop %v409
    %v411 = vsel %vm167, %v396, 0.0
    %412 = vadd.xlane.f32.xlu0 %v411
    %v413 = vpop.xlane.xlu0 %412
    %v414 = vsel %vm167, %v398, 0.0
    %415 = vadd.xlane.f32.xlu0 %v414
    %v416 = vpop.xlane.xlu0 %415
    %v417 = vsel %vm167, %v400, 0.0
    %418 = vadd.xlane.f32.xlu0 %v417
    %v419 = vpop.xlane.xlu0 %418
    %v420 = vsel %vm167, %v402, 0.0
    %421 = vadd.xlane.f32.xlu0 %v420
    %v422 = vpop.xlane.xlu0 %421
    %v423 = vsel %vm167, %v404, 0.0
    %424 = vadd.xlane.f32.xlu0 %v423
    %v425 = vpop.xlane.xlu0 %424
    %v426 = vsel %vm167, %v406, 0.0
    %427 = vadd.xlane.f32.xlu0 %v426
    %v428 = vpop.xlane.xlu0 %427
    %v429 = vsel %vm167, %v408, 0.0
    %430 = vadd.xlane.f32.xlu0 %v429
    %v431 = vpop.xlane.xlu0 %430
    %v432 = vsel %vm167, %v410, 0.0
    %433 = vadd.xlane.f32.xlu0 %v432
    %v434 = vpop.xlane.xlu0 %433
    %v435 = vrcp.pop %v413
    %v436 = vrcp.pop %v416
    %v437 = vrcp.pop %v419
    %v438 = vrcp.pop %v422
    %v439 = vrcp.pop %v425
    %v440 = vrcp.pop %v428
    %v441 = vrcp.pop %v431
    %v442 = vrcp.pop %v434
    %v443 = vmul.f32 %v396, %v435
    %v444 = vmul.f32 %v398, %v436
    %v445 = vmul.f32 %v400, %v437
    %v446 = vmul.f32 %v402, %v438
    %v447 = vmul.f32 %v404, %v439
    %v448 = vmul.f32 %v406, %v440
    %v449 = vmul.f32 %v408, %v441
    %v450 = vmul.f32 %v410, %v442
    %v451 = vpack.c.bf16 %v443, %v443
    %v452 = vpack.c.bf16 %v444, %v444
    %v453 = vpack.c.bf16 %v445, %v445
    %v454 = vpack.c.bf16 %v446, %v446
    %v455 = vpack.c.bf16 %v447, %v447
    %v456 = vpack.c.bf16 %v448, %v448
    %v457 = vpack.c.bf16 %v449, %v449
    %v458 = vpack.c.bf16 %v450, %v450
    %459 = vrot.lane.b32.xlu0 %v164, 64
    %v460 = vpop.permute.xlu0 %459
    %v462 = vsel %vm167, %v451, 0
    %vm464 = vcmask 1043456
    %v466 = vsel %vm464, %v460, 0
    %468 = vmatpush.bf16.msra.mxu0 0
    %469 = vmatpush.bf16.msra.mxu0 0
    %470 = vmatpush.bf16.msra.mxu0 0
    %471 = vmatpush.bf16.msra.mxu0 0
    %472 = vmatpush.bf16.msra.mxu0 0
    %473 = vmatpush.bf16.msra.mxu0 0
    %474 = vmatpush.bf16.msra.mxu0 0
    %475 = vmatpush.bf16.msra.mxu0 %v466
    %476 = vmatmul.bf16.gmra.mxu0 %v462
    %v477 = vpop.f32.mrf.mxu0
    %v478 = vadd.f32 0.0, %v477
    %v479 = vpop.f32.mrf.mxu0
    %480 = vdwg.mxu0
    %481 = vrot.lane.b32.xlu0 %v189, 64
    %v482 = vpop.permute.xlu0 %481
    %v484 = vsel %vm167, %v452, 0
    %v487 = vsel %vm464, %v482, 0
    %489 = vmatpush.bf16.msra.mxu0 0
    %490 = vmatpush.bf16.msra.mxu0 0
    %491 = vmatpush.bf16.msra.mxu0 0
    %492 = vmatpush.bf16.msra.mxu0 0
    %493 = vmatpush.bf16.msra.mxu0 0
    %494 = vmatpush.bf16.msra.mxu0 0
    %495 = vmatpush.bf16.msra.mxu0 0
    %496 = vmatpush.bf16.msra.mxu0 %v487
    %497 = vmatmul.bf16.gmra.mxu0 %v484
    %v498 = vpop.f32.mrf.mxu0
    %v499 = vadd.f32 0.0, %v498
    %v500 = vpop.f32.mrf.mxu0
    %501 = vdwg.mxu0
    %502 = vrot.lane.b32.xlu0 %v213, 64
    %v503 = vpop.permute.xlu0 %502
    %v505 = vsel %vm167, %v453, 0
    %v508 = vsel %vm464, %v503, 0
    %510 = vmatpush.bf16.msra.mxu0 0
    %511 = vmatpush.bf16.msra.mxu0 0
    %512 = vmatpush.bf16.msra.mxu0 0
    %513 = vmatpush.bf16.msra.mxu0 0
    %514 = vmatpush.bf16.msra.mxu0 0
    %515 = vmatpush.bf16.msra.mxu0 0
    %516 = vmatpush.bf16.msra.mxu0 0
    %517 = vmatpush.bf16.msra.mxu0 %v508
    %518 = vmatmul.bf16.gmra.mxu0 %v505
    %v519 = vpop.f32.mrf.mxu0
    %v520 = vadd.f32 0.0, %v519
    %v521 = vpop.f32.mrf.mxu0
    %522 = vdwg.mxu0
    %523 = vrot.lane.b32.xlu0 %v237, 64
    %v524 = vpop.permute.xlu0 %523
    %v526 = vsel %vm167, %v454, 0
    %v529 = vsel %vm464, %v524, 0
    %531 = vmatpush.bf16.msra.mxu0 0
    %532 = vmatpush.bf16.msra.mxu0 0
    %533 = vmatpush.bf16.msra.mxu0 0
    %534 = vmatpush.bf16.msra.mxu0 0
    %535 = vmatpush.bf16.msra.mxu0 0
    %536 = vmatpush.bf16.msra.mxu0 0
    %537 = vmatpush.bf16.msra.mxu0 0
    %538 = vmatpush.bf16.msra.mxu0 %v529
    %539 = vmatmul.bf16.gmra.mxu0 %v526
    %v540 = vpop.f32.mrf.mxu0
    %v541 = vadd.f32 0.0, %v540
    %v542 = vpop.f32.mrf.mxu0
    %543 = vdwg.mxu0
    %544 = vrot.lane.b32.xlu0 %v261, 64
    %v545 = vpop.permute.xlu0 %544
    %v547 = vsel %vm167, %v455, 0
    %v550 = vsel %vm464, %v545, 0
    %552 = vmatpush.bf16.msra.mxu0 0
    %553 = vmatpush.bf16.msra.mxu0 0
    %554 = vmatpush.bf16.msra.mxu0 0
    %555 = vmatpush.bf16.msra.mxu0 0
    %556 = vmatpush.bf16.msra.mxu0 0
    %557 = vmatpush.bf16.msra.mxu0 0
    %558 = vmatpush.bf16.msra.mxu0 0
    %559 = vmatpush.bf16.msra.mxu0 %v550
    %560 = vmatmul.bf16.gmra.mxu0 %v547
    %v561 = vpop.f32.mrf.mxu0
    %v562 = vadd.f32 0.0, %v561
    %v563 = vpop.f32.mrf.mxu0
    %564 = vdwg.mxu0
    %565 = vrot.lane.b32.xlu0 %v285, 64
    %v566 = vpop.permute.xlu0 %565
    %v568 = vsel %vm167, %v456, 0
    %v571 = vsel %vm464, %v566, 0
    %573 = vmatpush.bf16.msra.mxu0 0
    %574 = vmatpush.bf16.msra.mxu0 0
    %575 = vmatpush.bf16.msra.mxu0 0
    %576 = vmatpush.bf16.msra.mxu0 0
    %577 = vmatpush.bf16.msra.mxu0 0
    %578 = vmatpush.bf16.msra.mxu0 0
    %579 = vmatpush.bf16.msra.mxu0 0
    %580 = vmatpush.bf16.msra.mxu0 %v571
    %581 = vmatmul.bf16.gmra.mxu0 %v568
    %v582 = vpop.f32.mrf.mxu0
    %v583 = vadd.f32 0.0, %v582
    %v584 = vpop.f32.mrf.mxu0
    %585 = vdwg.mxu0
    %586 = vrot.lane.b32.xlu0 %v309, 64
    %v587 = vpop.permute.xlu0 %586
    %v589 = vsel %vm167, %v457, 0
    %v592 = vsel %vm464, %v587, 0
    %594 = vmatpush.bf16.msra.mxu0 0
    %595 = vmatpush.bf16.msra.mxu0 0
    %596 = vmatpush.bf16.msra.mxu0 0
    %597 = vmatpush.bf16.msra.mxu0 0
    %598 = vmatpush.bf16.msra.mxu0 0
    %599 = vmatpush.bf16.msra.mxu0 0
    %600 = vmatpush.bf16.msra.mxu0 0
    %601 = vmatpush.bf16.msra.mxu0 %v592
    %602 = vmatmul.bf16.gmra.mxu0 %v589
    %v603 = vpop.f32.mrf.mxu0
    %v604 = vadd.f32 0.0, %v603
    %v605 = vpop.f32.mrf.mxu0
    %606 = vdwg.mxu0
    %607 = vrot.lane.b32.xlu0 %v333, 64
    %v608 = vpop.permute.xlu0 %607
    %v610 = vsel %vm167, %v458, 0
    %v613 = vsel %vm464, %v608, 0
    %615 = vmatpush.bf16.msra.mxu0 0
    %616 = vmatpush.bf16.msra.mxu0 0
    %617 = vmatpush.bf16.msra.mxu0 0
    %618 = vmatpush.bf16.msra.mxu0 0
    %619 = vmatpush.bf16.msra.mxu0 0
    %620 = vmatpush.bf16.msra.mxu0 0
    %621 = vmatpush.bf16.msra.mxu0 0
    %622 = vmatpush.bf16.msra.mxu0 %v613
    %623 = vmatmul.bf16.gmra.mxu0 %v610
    %v624 = vpop.f32.mrf.mxu0
    %v625 = vadd.f32 0.0, %v624
    %v626 = vpop.f32.mrf.mxu0
    %627 = vdwg.mxu0
    %630 = vrot.lane.b32.xlu0 %v499, 8
    %v631 = vpop.permute.xlu0 %630
    %632 = vrot.lane.b32.xlu0 %v583, 8
    %v633 = vpop.permute.xlu0 %632
    %638 = vrot.lane.b32.xlu0 %v520, 16
    %v639 = vpop.permute.xlu0 %638
    %640 = vrot.lane.b32.xlu0 %v604, 16
    %v641 = vpop.permute.xlu0 %640
    %646 = vrot.lane.b32.xlu0 %v541, 24
    %v647 = vpop.permute.xlu0 %646
    %648 = vrot.lane.b32.xlu0 %v625, 24
    %v649 = vpop.permute.xlu0 %648
    %v652 = vsel %vm167, %v478, %v631
    %v653 = vsel %vm167, %v562, %v633
    %vm654 = vcmask 130048
    %v655 = vsel %vm654, %v652, %v639
    %v656 = vsel %vm654, %v653, %v641
    %vm657 = vcmask 195584
    %v658 = vsel %vm657, %v655, %v647
    %v659 = vsel %vm657, %v656, %v649
    %v660 = vpack.c.bf16 %v659, %v658
    %v661 = vperm.slane %v21, 2
    %v662 = vunpack.c.h.b16 %v23
    %v663 = vunpack.c.h.b16 %v25
    %v664 = vunpack.c.h.b16 %v27
    %v665 = vunpack.c.h.b16 %v29
    %v666 = vpack.c.b16 %v663, %v662
    %v667 = vpack.c.b16 %v665, %v664
    %v671 = vsel %vm39, %v660, 0
    %673 = vmatpush.bf16.msra.mxu0 0
    %674 = vmatpush.bf16.msra.mxu0 0
    %675 = vmatpush.bf16.msra.mxu0 0
    %676 = vmatpush.bf16.msra.mxu0 0
    %677 = vmatpush.bf16.msra.mxu0 0
    %678 = vmatpush.bf16.msra.mxu0 0
    %679 = vmatpush.bf16.msra.mxu0 %v667
    %680 = vmatpush.bf16.msra.mxu0 %v666
    %681 = vmatmul.bf16.gmra.mxu0 %v671
    %v682 = vpop.f32.mrf.mxu0
    %v683 = vadd.f32 %v661, %v682
    %v684 = vpop.f32.mrf.mxu0
    %v685 = vadd.f32 %v661, %v684
    %686 = vdwg.mxu0
    %v687 = vadd.f32 %v19, %v683
    %v688 = vadd.f32 %v20, %v685
    %v689 = vsel %vm39, %v687, 0.0
    %690 = vadd.xlane.f32.xlu0 %v689
    %v691 = vpop.xlane.xlu0 %690
    %v692 = vsel %vm39, %v688, 0.0
    %693 = vadd.xlane.f32.xlu0 %v692
    %v694 = vpop.xlane.xlu0 %693
    %v695 = vmul.f32 %v691, %v52
    %v696 = vmul.f32 %v694, %v52
    %v697 = vmul.f32 %v687, %v687
    %v698 = vmul.f32 %v688, %v688
    %v699 = vsel %vm39, %v697, 0.0
    %700 = vadd.xlane.f32.xlu0 %v699
    %v701 = vpop.xlane.xlu0 %700
    %v702 = vsel %vm39, %v698, 0.0
    %703 = vadd.xlane.f32.xlu0 %v702
    %v704 = vpop.xlane.xlu0 %703
    %v705 = vmul.f32 %v701, %v52
    %v706 = vmul.f32 %v704, %v52
    %v707 = vmul.f32 %v695, %v695
    %v708 = vmul.f32 %v696, %v696
    %v709 = vsub.f32 %v705, %v707
    %v710 = vsub.f32 %v706, %v708
    %v711 = vsub.f32 %v687, %v695
    %v712 = vsub.f32 %v688, %v696
    %v713 = vadd.f32 %v709, 1e-05
    %v714 = vadd.f32 %v710, 1e-05
    %v715 = vrsqrt.pop %v713
    %v716 = vmul.f32 %v715, %v713
    %v717 = vmul.f32 %v716, %v715
    %v718 = vmul.f32 0.5, %v717
    %v719 = vsub.f32 1.5, %v718
    %v720 = vmul.f32 %v715, %v719
    %vm721 = vweird.f32 %v713
    %vm722 = vweird.f32 %v715
    %vm723 = vmor %vm721, %vm722
    %v724 = vsel %vm723, %v715, %v720
    %v725 = vrsqrt.pop %v714
    %v726 = vmul.f32 %v725, %v714
    %v727 = vmul.f32 %v726, %v725
    %v728 = vmul.f32 0.5, %v727
    %v729 = vsub.f32 1.5, %v728
    %v730 = vmul.f32 %v725, %v729
    %vm731 = vweird.f32 %v714
    %vm732 = vweird.f32 %v725
    %vm733 = vmor %vm731, %vm732
    %v734 = vsel %vm733, %v725, %v730
    %v735 = vmul.f32 %v711, %v724
    %v736 = vmul.f32 %v712, %v734
    %v737 = vperm.slane %v21, 1
    %v738 = vmul.f32 %v735, %v737
    %v739 = vmul.f32 %v736, %v737
    %741 = vrot.lane.b32.xlu0 %v737, 96
    %v742 = vpop.permute.xlu0 %741
    %v744 = vadd.f32 %v738, %v742
    %v745 = vadd.f32 %v739, %v742
    %v746 = vpack.c.bf16 %v745, %v744
    %v747 = vperm.slane %v21, 3
    %v752 = vunpack.c.l.b16 %v24
    %v753 = vunpack.c.l.b16 %v26
    %v754 = vunpack.c.l.b16 %v28
    %v755 = vunpack.c.l.b16 %v30
    %v756 = vpack.c.b16 %v753, %v752
    %v757 = vpack.c.b16 %v755, %v754
    %v761 = vsel %vm39, %v746, 0
    %763 = vmatpush.bf16.msra.mxu0 0
    %764 = vmatpush.bf16.msra.mxu0 0
    %765 = vmatpush.bf16.msra.mxu0 0
    %766 = vmatpush.bf16.msra.mxu0 0
    %767 = vmatpush.bf16.msra.mxu0 0
    %768 = vmatpush.bf16.msra.mxu0 0
    %769 = vmatpush.bf16.msra.mxu0 %v757
    %770 = vmatpush.bf16.msra.mxu0 %v756
    %771 = vmatmul.bf16.gmra.mxu0 %v761
    %v772 = vpop.f32.mrf.mxu0
    %v773 = vadd.f32 %v747, %v772
    %v774 = vpop.f32.mrf.mxu0
    %v775 = vadd.f32 %v747, %v774
    %776 = vdwg.mxu0
    %v777 = vmul.f32 %v773, %v773
    %v778 = vmul.f32 %v775, %v775
    %v779 = vmul.f32 %v773, %v777
    %v780 = vmul.f32 %v775, %v778
    %v781 = vmul.f32 %v779, 0.044715
    %v782 = vmul.f32 %v780, 0.044715
    %v783 = vadd.f32 %v773, %v781
    %v784 = vadd.f32 %v775, %v782
    %v785 = vmul.f32 %v783, 0.7978846
    %v786 = vmul.f32 %v784, 0.7978846
    %v787 = vtanh.pop %v785
    %v788 = vtanh.pop %v786
    %v789 = vadd.f32 %v787, 1.0
    %v790 = vadd.f32 %v788, 1.0
    %v791 = vmul.f32 %v789, 0.5
    %v792 = vmul.f32 %v790, 0.5
    %v793 = vmul.f32 %v773, %v791
    %v794 = vmul.f32 %v775, %v792
    %v795 = vpack.c.bf16 %v794, %v793
    %v804 = vunpack.c.l.b16 %v31
    %v805 = vunpack.c.l.b16 %v32
    %v806 = vunpack.c.l.b16 %v33
    %v807 = vunpack.c.l.b16 %v34
    %v808 = vunpack.c.l.b16 %v35
    %v809 = vunpack.c.l.b16 %v36
    %v810 = vunpack.c.l.b16 %v37
    %v811 = vunpack.c.l.b16 %v38
    %v812 = vpack.c.b16 %v805, %v804
    %v813 = vpack.c.b16 %v807, %v806
    %v814 = vpack.c.b16 %v809, %v808
    %v815 = vpack.c.b16 %v811, %v810
    %821 = vrot.lane.b32.xlu0 %v661, 96
    %v822 = vpop.permute.xlu0 %821
    %vm824 = vcmask 523264
    %v826 = vsel %vm824, %v795, 0
    %828 = vmatpush.bf16.msra.mxu0 0
    %829 = vmatpush.bf16.msra.mxu0 0
    %830 = vmatpush.bf16.msra.mxu0 0
    %831 = vmatpush.bf16.msra.mxu0 0
    %832 = vmatpush.bf16.msra.mxu0 %v815
    %833 = vmatpush.bf16.msra.mxu0 %v814
    %834 = vmatpush.bf16.msra.mxu0 %v813
    %835 = vmatpush.bf16.msra.mxu0 %v812
    %836 = vmatmul.bf16.gmra.mxu0 %v826
    %v837 = vpop.f32.mrf.mxu0
    %v838 = vadd.f32 %v822, %v837
    %v839 = vpop.f32.mrf.mxu0
    %v840 = vadd.f32 %v822, %v839
    %841 = vdwg.mxu0
    %v842 = vadd.f32 %v687, %v838
    %v843 = vadd.f32 %v688, %v840
    %s844 = scalar_lea.vmem %s1, 48
    %v845 = vld [vmem:[%s844] sm:$0xff]
    %v846 = vld [vmem:[%s844 + $0x8] sm:$0xf]
    %v847 = vld [vmem:[%s844 + $0xc] sm:$0xff]
    %v848 = vld [vmem:[%s844 + $0x14] sm:$0xf]
    %v849 = vld [vmem:[%s844 + $0x18] sm:$0xff]
    %v850 = vld [vmem:[%s844 + $0x20] sm:$0xf]
    %v851 = vld [vmem:[%s844 + $0x24] sm:$0xff]
    %v852 = vld [vmem:[%s844 + $0x2c] sm:$0xf]
    %s853 = scalar_lea.vmem %s2, 32
    %v854 = vld [vmem:[%s853] sm:$0xf]
    %v855 = vld [vmem:[%s853 + $0x4] sm:$0xf]
    %v856 = vld [vmem:[%s853 + $0x8] sm:$0xf]
    %v857 = vld [vmem:[%s853 + $0xc] sm:$0xf]
    %v858 = vld [vmem:[%s853 + $0x10] sm:$0xf]
    %v859 = vld [vmem:[%s853 + $0x14] sm:$0xf]
    %v860 = vld [vmem:[%s853 + $0x18] sm:$0xf]
    %v861 = vld [vmem:[%s853 + $0x1c] sm:$0xf]
    %v862 = vsel %vm39, %v842, 0.0
    %863 = vadd.xlane.f32.xlu0 %v862
    %v864 = vpop.xlane.xlu0 %863
    %v865 = vsel %vm39, %v843, 0.0
    %866 = vadd.xlane.f32.xlu0 %v865
    %v867 = vpop.xlane.xlu0 %866
    %v868 = vmul.f32 %v864, %v52
    %v869 = vmul.f32 %v867, %v52
    %v870 = vmul.f32 %v842, %v842
    %v871 = vmul.f32 %v843, %v843
    %v872 = vsel %vm39, %v870, 0.0
    %873 = vadd.xlane.f32.xlu0 %v872
    %v874 = vpop.xlane.xlu0 %873
    %v875 = vsel %vm39, %v871, 0.0
    %876 = vadd.xlane.f32.xlu0 %v875
    %v877 = vpop.xlane.xlu0 %876
    %v878 = vmul.f32 %v874, %v52
    %v879 = vmul.f32 %v877, %v52
    %v880 = vmul.f32 %v868, %v868
    %v881 = vmul.f32 %v869, %v869
    %v882 = vsub.f32 %v878, %v880
    %v883 = vsub.f32 %v879, %v881
    %v884 = vsub.f32 %v842, %v868
    %v885 = vsub.f32 %v843, %v869
    %v886 = vadd.f32 %v882, 1e-05
    %v887 = vadd.f32 %v883, 1e-05
    %v888 = vrsqrt.pop %v886
    %v889 = vmul.f32 %v888, %v886
    %v890 = vmul.f32 %v889, %v888
    %v891 = vmul.f32 0.5, %v890
    %v892 = vsub.f32 1.5, %v891
    %v893 = vmul.f32 %v888, %v892
    %vm894 = vweird.f32 %v886
    %vm895 = vweird.f32 %v888
    %vm896 = vmor %vm894, %vm895
    %v897 = vsel %vm896, %v888, %v893
    %v898 = vrsqrt.pop %v887
    %v899 = vmul.f32 %v898, %v887
    %v900 = vmul.f32 %v899, %v898
    %v901 = vmul.f32 0.5, %v900
    %v902 = vsub.f32 1.5, %v901
    %v903 = vmul.f32 %v898, %v902
    %vm904 = vweird.f32 %v887
    %vm905 = vweird.f32 %v898
    %vm906 = vmor %vm904, %vm905
    %v907 = vsel %vm906, %v898, %v903
    %v908 = vmul.f32 %v884, %v897
    %v909 = vmul.f32 %v885, %v907
    %v910 = vperm.slane %v21, 4
    %v911 = vmul.f32 %v908, %v910
    %v912 = vmul.f32 %v909, %v910
    %914 = vrot.lane.b32.xlu0 %v910, 96
    %v915 = vpop.permute.xlu0 %914
    %v917 = vadd.f32 %v911, %v915
    %v918 = vadd.f32 %v912, %v915
    %v919 = vpack.c.bf16 %v918, %v917
    %v924 = vunpack.c.l.b16 %v845
    %v925 = vunpack.c.l.b16 %v847
    %v926 = vunpack.c.l.b16 %v849
    %v927 = vunpack.c.l.b16 %v851
    %v928 = vpack.c.b16 %v925, %v924
    %v929 = vpack.c.b16 %v927, %v926
    %v933 = vsel %vm39, %v919, 0
    %935 = vmatpush.bf16.msra.mxu0 0
    %936 = vmatpush.bf16.msra.mxu0 0
    %937 = vmatpush.bf16.msra.mxu0 0
    %938 = vmatpush.bf16.msra.mxu0 0
    %939 = vmatpush.bf16.msra.mxu0 0
    %940 = vmatpush.bf16.msra.mxu0 0
    %941 = vmatpush.bf16.msra.mxu0 %v929
    %942 = vmatpush.bf16.msra.mxu0 %v928
    %943 = vmatmul.bf16.gmra.mxu0 %v933
    %v944 = vpop.f32.mrf.mxu0
    %v945 = vadd.f32 0.0, %v944
    %v946 = vpop.f32.mrf.mxu0
    %v947 = vadd.f32 0.0, %v946
    %948 = vdwg.mxu0
    %951 = vrot.lane.b32.xlu0 %v945, 120
    %v952 = vpop.permute.xlu0 %951
    %953 = vrot.lane.b32.xlu0 %v947, 120
    %v954 = vpop.permute.xlu0 %953
    %957 = vrot.lane.b32.xlu0 %v945, 112
    %v958 = vpop.permute.xlu0 %957
    %959 = vrot.lane.b32.xlu0 %v947, 112
    %v960 = vpop.permute.xlu0 %959
    %963 = vrot.lane.b32.xlu0 %v945, 104
    %v964 = vpop.permute.xlu0 %963
    %965 = vrot.lane.b32.xlu0 %v947, 104
    %v966 = vpop.permute.xlu0 %965
    %v969 = vpack.c.bf16 %v945, %v945
    %v970 = vpack.c.bf16 %v952, %v952
    %v971 = vpack.c.bf16 %v958, %v958
    %v972 = vpack.c.bf16 %v964, %v964
    %v973 = vpack.c.bf16 %v947, %v947
    %v974 = vpack.c.bf16 %v954, %v954
    %v975 = vpack.c.bf16 %v960, %v960
    %v976 = vpack.c.bf16 %v966, %v966
    %v978 = vunpack.c.l.b16 %v969
    %v979 = vpack.c.b16 %v978, %v978
    %980 = vrot.lane.b32.xlu0 %v979, 96
    %v981 = vpop.permute.xlu0 %980
    %v983 = vsel %vm167, %v969, 0
    %v986 = vsel %vm167, %v981, 0
    %988 = vmatpush.bf16.xpose.msra.mxu0 0
    %989 = vmatpush.bf16.xpose.msra.mxu0 0
    %990 = vmatpush.bf16.xpose.msra.mxu0 0
    %991 = vmatpush.bf16.xpose.msra.mxu0 0
    %992 = vmatpush.bf16.xpose.msra.mxu0 0
    %993 = vmatpush.bf16.xpose.msra.mxu0 0
    %994 = vmatpush.bf16.xpose.msra.mxu0 0
    %995 = vmatpush.bf16.xpose.msra.mxu0 %v986
    %996 = vmatmul.bf16.gmra.mxu0 %v983
    %v997 = vpop.f32.mrf.mxu0
    %v998 = vadd.f32 0.0, %v997
    %v999 = vpop.f32.mrf.mxu0
    %1000 = vdwg.mxu0
    %v1002 = vunpack.c.l.b16 %v970
    %v1003 = vpack.c.b16 %v1002, %v1002
    %1004 = vrot.lane.b32.xlu0 %v1003, 96
    %v1005 = vpop.permute.xlu0 %1004
    %v1007 = vsel %vm167, %v970, 0
    %v1010 = vsel %vm167, %v1005, 0
    %1012 = vmatpush.bf16.xpose.msra.mxu0 0
    %1013 = vmatpush.bf16.xpose.msra.mxu0 0
    %1014 = vmatpush.bf16.xpose.msra.mxu0 0
    %1015 = vmatpush.bf16.xpose.msra.mxu0 0
    %1016 = vmatpush.bf16.xpose.msra.mxu0 0
    %1017 = vmatpush.bf16.xpose.msra.mxu0 0
    %1018 = vmatpush.bf16.xpose.msra.mxu0 0
    %1019 = vmatpush.bf16.xpose.msra.mxu0 %v1010
    %1020 = vmatmul.bf16.gmra.mxu0 %v1007
    %v1021 = vpop.f32.mrf.mxu0
    %v1022 = vadd.f32 0.0, %v1021
    %v1023 = vpop.f32.mrf.mxu0
    %1024 = vdwg.mxu0
    %v1026 = vunpack.c.l.b16 %v971
    %v1027 = vpack.c.b16 %v1026, %v1026
    %1028 = vrot.lane.b32.xlu0 %v1027, 96
    %v1029 = vpop.permute.xlu0 %1028
    %v1031 = vsel %vm167, %v971, 0
    %v1034 = vsel %vm167, %v1029, 0
    %1036 = vmatpush.bf16.xpose.msra.mxu0 0
    %1037 = vmatpush.bf16.xpose.msra.mxu0 0
    %1038 = vmatpush.bf16.xpose.msra.mxu0 0
    %1039 = vmatpush.bf16.xpose.msra.mxu0 0
    %1040 = vmatpush.bf16.xpose.msra.mxu0 0
    %1041 = vmatpush.bf16.xpose.msra.mxu0 0
    %1042 = vmatpush.bf16.xpose.msra.mxu0 0
    %1043 = vmatpush.bf16.xpose.msra.mxu0 %v1034
    %1044 = vmatmul.bf16.gmra.mxu0 %v1031
    %v1045 = vpop.f32.mrf.mxu0
    %v1046 = vadd.f32 0.0, %v1045
    %v1047 = vpop.f32.mrf.mxu0
    %1048 = vdwg.mxu0
    %v1050 = vunpack.c.l.b16 %v972
    %v1051 = vpack.c.b16 %v1050, %v1050
    %1052 = vrot.lane.b32.xlu0 %v1051, 96
    %v1053 = vpop.permute.xlu0 %1052
    %v1055 = vsel %vm167, %v972, 0
    %v1058 = vsel %vm167, %v1053, 0
    %1060 = vmatpush.bf16.xpose.msra.mxu0 0
    %1061 = vmatpush.bf16.xpose.msra.mxu0 0
    %1062 = vmatpush.bf16.xpose.msra.mxu0 0
    %1063 = vmatpush.bf16.xpose.msra.mxu0 0
    %1064 = vmatpush.bf16.xpose.msra.mxu0 0
    %1065 = vmatpush.bf16.xpose.msra.mxu0 0
    %1066 = vmatpush.bf16.xpose.msra.mxu0 0
    %1067 = vmatpush.bf16.xpose.msra.mxu0 %v1058
    %1068 = vmatmul.bf16.gmra.mxu0 %v1055
    %v1069 = vpop.f32.mrf.mxu0
    %v1070 = vadd.f32 0.0, %v1069
    %v1071 = vpop.f32.mrf.mxu0
    %1072 = vdwg.mxu0
    %v1074 = vunpack.c.l.b16 %v973
    %v1075 = vpack.c.b16 %v1074, %v1074
    %1076 = vrot.lane.b32.xlu0 %v1075, 96
    %v1077 = vpop.permute.xlu0 %1076
    %v1079 = vsel %vm167, %v973, 0
    %v1082 = vsel %vm167, %v1077, 0
    %1084 = vmatpush.bf16.xpose.msra.mxu0 0
    %1085 = vmatpush.bf16.xpose.msra.mxu0 0
    %1086 = vmatpush.bf16.xpose.msra.mxu0 0
    %1087 = vmatpush.bf16.xpose.msra.mxu0 0
    %1088 = vmatpush.bf16.xpose.msra.mxu0 0
    %1089 = vmatpush.bf16.xpose.msra.mxu0 0
    %1090 = vmatpush.bf16.xpose.msra.mxu0 0
    %1091 = vmatpush.bf16.xpose.msra.mxu0 %v1082
    %1092 = vmatmul.bf16.gmra.mxu0 %v1079
    %v1093 = vpop.f32.mrf.mxu0
    %v1094 = vadd.f32 0.0, %v1093
    %v1095 = vpop.f32.mrf.mxu0
    %1096 = vdwg.mxu0
    %v1098 = vunpack.c.l.b16 %v974
    %v1099 = vpack.c.b16 %v1098, %v1098
    %1100 = vrot.lane.b32.xlu0 %v1099, 96
    %v1101 = vpop.permute.xlu0 %1100
    %v1103 = vsel %vm167, %v974, 0
    %v1106 = vsel %vm167, %v1101, 0
    %1108 = vmatpush.bf16.xpose.msra.mxu0 0
    %1109 = vmatpush.bf16.xpose.msra.mxu0 0
    %1110 = vmatpush.bf16.xpose.msra.mxu0 0
    %1111 = vmatpush.bf16.xpose.msra.mxu0 0
    %1112 = vmatpush.bf16.xpose.msra.mxu0 0
    %1113 = vmatpush.bf16.xpose.msra.mxu0 0
    %1114 = vmatpush.bf16.xpose.msra.mxu0 0
    %1115 = vmatpush.bf16.xpose.msra.mxu0 %v1106
    %1116 = vmatmul.bf16.gmra.mxu0 %v1103
    %v1117 = vpop.f32.mrf.mxu0
    %v1118 = vadd.f32 0.0, %v1117
    %v1119 = vpop.f32.mrf.mxu0
    %1120 = vdwg.mxu0
    %v1122 = vunpack.c.l.b16 %v975
    %v1123 = vpack.c.b16 %v1122, %v1122
    %1124 = vrot.lane.b32.xlu0 %v1123, 96
    %v1125 = vpop.permute.xlu0 %1124
    %v1127 = vsel %vm167, %v975, 0
    %v1130 = vsel %vm167, %v1125, 0
    %1132 = vmatpush.bf16.xpose.msra.mxu0 0
    %1133 = vmatpush.bf16.xpose.msra.mxu0 0
    %1134 = vmatpush.bf16.xpose.msra.mxu0 0
    %1135 = vmatpush.bf16.xpose.msra.mxu0 0
    %1136 = vmatpush.bf16.xpose.msra.mxu0 0
    %1137 = vmatpush.bf16.xpose.msra.mxu0 0
    %1138 = vmatpush.bf16.xpose.msra.mxu0 0
    %1139 = vmatpush.bf16.xpose.msra.mxu0 %v1130
    %1140 = vmatmul.bf16.gmra.mxu0 %v1127
    %v1141 = vpop.f32.mrf.mxu0
    %v1142 = vadd.f32 0.0, %v1141
    %v1143 = vpop.f32.mrf.mxu0
    %1144 = vdwg.mxu0
    %v1146 = vunpack.c.l.b16 %v976
    %v1147 = vpack.c.b16 %v1146, %v1146
    %1148 = vrot.lane.b32.xlu0 %v1147, 96
    %v1149 = vpop.permute.xlu0 %1148
    %v1151 = vsel %vm167, %v976, 0
    %v1154 = vsel %vm167, %v1149, 0
    %1156 = vmatpush.bf16.xpose.msra.mxu0 0
    %1157 = vmatpush.bf16.xpose.msra.mxu0 0
    %1158 = vmatpush.bf16.xpose.msra.mxu0 0
    %1159 = vmatpush.bf16.xpose.msra.mxu0 0
    %1160 = vmatpush.bf16.xpose.msra.mxu0 0
    %1161 = vmatpush.bf16.xpose.msra.mxu0 0
    %1162 = vmatpush.bf16.xpose.msra.mxu0 0
    %1163 = vmatpush.bf16.xpose.msra.mxu0 %v1154
    %1164 = vmatmul.bf16.gmra.mxu0 %v1151
    %v1165 = vpop.f32.mrf.mxu0
    %v1166 = vadd.f32 0.0, %v1165
    %v1167 = vpop.f32.mrf.mxu0
    %1168 = vdwg.mxu0
    %v1169 = vmul.f32 %v998, 0.35355338
    %v1170 = vmul.f32 %v1022, 0.35355338
    %v1171 = vmul.f32 %v1046, 0.35355338
    %v1172 = vmul.f32 %v1070, 0.35355338
    %v1173 = vmul.f32 %v1094, 0.35355338
    %v1174 = vmul.f32 %v1118, 0.35355338
    %v1175 = vmul.f32 %v1142, 0.35355338
    %v1176 = vmul.f32 %v1166, 0.35355338
    %v1177 = vsel %vm167, %v1169, -inf
    %1178 = vmax.xlane.f32.xlu0 %v1177
    %v1179 = vpop.xlane.xlu0 %1178
    %v1180 = vsel %vm167, %v1170, -inf
    %1181 = vmax.xlane.f32.xlu0 %v1180
    %v1182 = vpop.xlane.xlu0 %1181
    %v1183 = vsel %vm167, %v1171, -inf
    %1184 = vmax.xlane.f32.xlu0 %v1183
    %v1185 = vpop.xlane.xlu0 %1184
    %v1186 = vsel %vm167, %v1172, -inf
    %1187 = vmax.xlane.f32.xlu0 %v1186
    %v1188 = vpop.xlane.xlu0 %1187
    %v1189 = vsel %vm167, %v1173, -inf
    %1190 = vmax.xlane.f32.xlu0 %v1189
    %v1191 = vpop.xlane.xlu0 %1190
    %v1192 = vsel %vm167, %v1174, -inf
    %1193 = vmax.xlane.f32.xlu0 %v1192
    %v1194 = vpop.xlane.xlu0 %1193
    %v1195 = vsel %vm167, %v1175, -inf
    %1196 = vmax.xlane.f32.xlu0 %v1195
    %v1197 = vpop.xlane.xlu0 %1196
    %v1198 = vsel %vm167, %v1176, -inf
    %1199 = vmax.xlane.f32.xlu0 %v1198
    %v1200 = vpop.xlane.xlu0 %1199
    %v1201 = vsub.f32 %v1169, %v1179
    %v1202 = vsub.f32 %v1170, %v1182
    %v1203 = vsub.f32 %v1171, %v1185
    %v1204 = vsub.f32 %v1172, %v1188
    %v1205 = vsub.f32 %v1173, %v1191
    %v1206 = vsub.f32 %v1174, %v1194
    %v1207 = vsub.f32 %v1175, %v1197
    %v1208 = vsub.f32 %v1176, %v1200
    %v1209 = vmul.f32 %v1201, 1.442695
    %v1210 = vpow.pop %v1209
    %v1211 = vmul.f32 %v1202, 1.442695
    %v1212 = vpow.pop %v1211
    %v1213 = vmul.f32 %v1203, 1.442695
    %v1214 = vpow.pop %v1213
    %v1215 = vmul.f32 %v1204, 1.442695
    %v1216 = vpow.pop %v1215
    %v1217 = vmul.f32 %v1205, 1.442695
    %v1218 = vpow.pop %v1217
    %v1219 = vmul.f32 %v1206, 1.442695
    %v1220 = vpow.pop %v1219
    %v1221 = vmul.f32 %v1207, 1.442695
    %v1222 = vpow.pop %v1221
    %v1223 = vmul.f32 %v1208, 1.442695
    %v1224 = vpow.pop %v1223
    %v1225 = vsel %vm167, %v1210, 0.0
    %1226 = vadd.xlane.f32.xlu0 %v1225
    %v1227 = vpop.xlane.xlu0 %1226
    %v1228 = vsel %vm167, %v1212, 0.0
    %1229 = vadd.xlane.f32.xlu0 %v1228
    %v1230 = vpop.xlane.xlu0 %1229
    %v1231 = vsel %vm167, %v1214, 0.0
    %1232 = vadd.xlane.f32.xlu0 %v1231
    %v1233 = vpop.xlane.xlu0 %1232
    %v1234 = vsel %vm167, %v1216, 0.0
    %1235 = vadd.xlane.f32.xlu0 %v1234
    %v1236 = vpop.xlane.xlu0 %1235
    %v1237 = vsel %vm167, %v1218, 0.0
    %1238 = vadd.xlane.f32.xlu0 %v1237
    %v1239 = vpop.xlane.xlu0 %1238
    %v1240 = vsel %vm167, %v1220, 0.0
    %1241 = vadd.xlane.f32.xlu0 %v1240
    %v1242 = vpop.xlane.xlu0 %1241
    %v1243 = vsel %vm167, %v1222, 0.0
    %1244 = vadd.xlane.f32.xlu0 %v1243
    %v1245 = vpop.xlane.xlu0 %1244
    %v1246 = vsel %vm167, %v1224, 0.0
    %1247 = vadd.xlane.f32.xlu0 %v1246
    %v1248 = vpop.xlane.xlu0 %1247
    %v1249 = vrcp.pop %v1227
    %v1250 = vrcp.pop %v1230
    %v1251 = vrcp.pop %v1233
    %v1252 = vrcp.pop %v1236
    %v1253 = vrcp.pop %v1239
    %v1254 = vrcp.pop %v1242
    %v1255 = vrcp.pop %v1245
    %v1256 = vrcp.pop %v1248
    %v1257 = vmul.f32 %v1210, %v1249
    %v1258 = vmul.f32 %v1212, %v1250
    %v1259 = vmul.f32 %v1214, %v1251
    %v1260 = vmul.f32 %v1216, %v1252
    %v1261 = vmul.f32 %v1218, %v1253
    %v1262 = vmul.f32 %v1220, %v1254
    %v1263 = vmul.f32 %v1222, %v1255
    %v1264 = vmul.f32 %v1224, %v1256
    %v1265 = vpack.c.bf16 %v1257, %v1257
    %v1266 = vpack.c.bf16 %v1258, %v1258
    %v1267 = vpack.c.bf16 %v1259, %v1259
    %v1268 = vpack.c.bf16 %v1260, %v1260
    %v1269 = vpack.c.bf16 %v1261, %v1261
    %v1270 = vpack.c.bf16 %v1262, %v1262
    %v1271 = vpack.c.bf16 %v1263, %v1263
    %v1272 = vpack.c.bf16 %v1264, %v1264
    %1273 = vrot.lane.b32.xlu0 %v979, 64
    %v1274 = vpop.permute.xlu0 %1273
    %v1276 = vsel %vm167, %v1265, 0
    %v1279 = vsel %vm464, %v1274, 0
    %1281 = vmatpush.bf16.msra.mxu0 0
    %1282 = vmatpush.bf16.msra.mxu0 0
    %1283 = vmatpush.bf16.msra.mxu0 0
    %1284 = vmatpush.bf16.msra.mxu0 0
    %1285 = vmatpush.bf16.msra.mxu0 0
    %1286 = vmatpush.bf16.msra.mxu0 0
    %1287 = vmatpush.bf16.msra.mxu0 0
    %1288 = vmatpush.bf16.msra.mxu0 %v1279
    %1289 = vmatmul.bf16.gmra.mxu0 %v1276
    %v1290 = vpop.f32.mrf.mxu0
    %v1291 = vadd.f32 0.0, %v1290
    %v1292 = vpop.f32.mrf.mxu0
    %1293 = vdwg.mxu0
    %1294 = vrot.lane.b32.xlu0 %v1003, 64
    %v1295 = vpop.permute.xlu0 %1294
    %v1297 = vsel %vm167, %v1266, 0
    %v1300 = vsel %vm464, %v1295, 0
    %1302 = vmatpush.bf16.msra.mxu0 0
    %1303 = vmatpush.bf16.msra.mxu0 0
    %1304 = vmatpush.bf16.msra.mxu0 0
    %1305 = vmatpush.bf16.msra.mxu0 0
    %1306 = vmatpush.bf16.msra.mxu0 0
    %1307 = vmatpush.bf16.msra.mxu0 0
    %1308 = vmatpush.bf16.msra.mxu0 0
    %1309 = vmatpush.bf16.msra.mxu0 %v1300
    %1310 = vmatmul.bf16.gmra.mxu0 %v1297
    %v1311 = vpop.f32.mrf.mxu0
    %v1312 = vadd.f32 0.0, %v1311
    %v1313 = vpop.f32.mrf.mxu0
    %1314 = vdwg.mxu0
    %1315 = vrot.lane.b32.xlu0 %v1027, 64
    %v1316 = vpop.permute.xlu0 %1315
    %v1318 = vsel %vm167, %v1267, 0
    %v1321 = vsel %vm464, %v1316, 0
    %1323 = vmatpush.bf16.msra.mxu0 0
    %1324 = vmatpush.bf16.msra.mxu0 0
    %1325 = vmatpush.bf16.msra.mxu0 0
    %1326 = vmatpush.bf16.msra.mxu0 0
    %1327 = vmatpush.bf16.msra.mxu0 0
    %1328 = vmatpush.bf16.msra.mxu0 0
    %1329 = vmatpush.bf16.msra.mxu0 0
    %1330 = vmatpush.bf16.msra.mxu0 %v1321
    %1331 = vmatmul.bf16.gmra.mxu0 %v1318
    %v1332 = vpop.f32.mrf.mxu0
    %v1333 = vadd.f32 0.0, %v1332
    %v1334 = vpop.f32.mrf.mxu0
    %1335 = vdwg.mxu0
    %1336 = vrot.lane.b32.xlu0 %v1051, 64
    %v1337 = vpop.permute.xlu0 %1336
    %v1339 = vsel %vm167, %v1268, 0
    %v1342 = vsel %vm464, %v1337, 0
    %1344 = vmatpush.bf16.msra.mxu0 0
    %1345 = vmatpush.bf16.msra.mxu0 0
    %1346 = vmatpush.bf16.msra.mxu0 0
    %1347 = vmatpush.bf16.msra.mxu0 0
    %1348 = vmatpush.bf16.msra.mxu0 0
    %1349 = vmatpush.bf16.msra.mxu0 0
    %1350 = vmatpush.bf16.msra.mxu0 0
    %1351 = vmatpush.bf16.msra.mxu0 %v1342
    %1352 = vmatmul.bf16.gmra.mxu0 %v1339
    %v1353 = vpop.f32.mrf.mxu0
    %v1354 = vadd.f32 0.0, %v1353
    %v1355 = vpop.f32.mrf.mxu0
    %1356 = vdwg.mxu0
    %1357 = vrot.lane.b32.xlu0 %v1075, 64
    %v1358 = vpop.permute.xlu0 %1357
    %v1360 = vsel %vm167, %v1269, 0
    %v1363 = vsel %vm464, %v1358, 0
    %1365 = vmatpush.bf16.msra.mxu0 0
    %1366 = vmatpush.bf16.msra.mxu0 0
    %1367 = vmatpush.bf16.msra.mxu0 0
    %1368 = vmatpush.bf16.msra.mxu0 0
    %1369 = vmatpush.bf16.msra.mxu0 0
    %1370 = vmatpush.bf16.msra.mxu0 0
    %1371 = vmatpush.bf16.msra.mxu0 0
    %1372 = vmatpush.bf16.msra.mxu0 %v1363
    %1373 = vmatmul.bf16.gmra.mxu0 %v1360
    %v1374 = vpop.f32.mrf.mxu0
    %v1375 = vadd.f32 0.0, %v1374
    %v1376 = vpop.f32.mrf.mxu0
    %1377 = vdwg.mxu0
    %1378 = vrot.lane.b32.xlu0 %v1099, 64
    %v1379 = vpop.permute.xlu0 %1378
    %v1381 = vsel %vm167, %v1270, 0
    %v1384 = vsel %vm464, %v1379, 0
    %1386 = vmatpush.bf16.msra.mxu0 0
    %1387 = vmatpush.bf16.msra.mxu0 0
    %1388 = vmatpush.bf16.msra.mxu0 0
    %1389 = vmatpush.bf16.msra.mxu0 0
    %1390 = vmatpush.bf16.msra.mxu0 0
    %1391 = vmatpush.bf16.msra.mxu0 0
    %1392 = vmatpush.bf16.msra.mxu0 0
    %1393 = vmatpush.bf16.msra.mxu0 %v1384
    %1394 = vmatmul.bf16.gmra.mxu0 %v1381
    %v1395 = vpop.f32.mrf.mxu0
    %v1396 = vadd.f32 0.0, %v1395
    %v1397 = vpop.f32.mrf.mxu0
    %1398 = vdwg.mxu0
    %1399 = vrot.lane.b32.xlu0 %v1123, 64
    %v1400 = vpop.permute.xlu0 %1399
    %v1402 = vsel %vm167, %v1271, 0
    %v1405 = vsel %vm464, %v1400, 0
    %1407 = vmatpush.bf16.msra.mxu0 0
    %1408 = vmatpush.bf16.msra.mxu0 0
    %1409 = vmatpush.bf16.msra.mxu0 0
    %1410 = vmatpush.bf16.msra.mxu0 0
    %1411 = vmatpush.bf16.msra.mxu0 0
    %1412 = vmatpush.bf16.msra.mxu0 0
    %1413 = vmatpush.bf16.msra.mxu0 0
    %1414 = vmatpush.bf16.msra.mxu0 %v1405
    %1415 = vmatmul.bf16.gmra.mxu0 %v1402
    %v1416 = vpop.f32.mrf.mxu0
    %v1417 = vadd.f32 0.0, %v1416
    %v1418 = vpop.f32.mrf.mxu0
    %1419 = vdwg.mxu0
    %1420 = vrot.lane.b32.xlu0 %v1147, 64
    %v1421 = vpop.permute.xlu0 %1420
    %v1423 = vsel %vm167, %v1272, 0
    %v1426 = vsel %vm464, %v1421, 0
    %1428 = vmatpush.bf16.msra.mxu0 0
    %1429 = vmatpush.bf16.msra.mxu0 0
    %1430 = vmatpush.bf16.msra.mxu0 0
    %1431 = vmatpush.bf16.msra.mxu0 0
    %1432 = vmatpush.bf16.msra.mxu0 0
    %1433 = vmatpush.bf16.msra.mxu0 0
    %1434 = vmatpush.bf16.msra.mxu0 0
    %1435 = vmatpush.bf16.msra.mxu0 %v1426
    %1436 = vmatmul.bf16.gmra.mxu0 %v1423
    %v1437 = vpop.f32.mrf.mxu0
    %v1438 = vadd.f32 0.0, %v1437
    %v1439 = vpop.f32.mrf.mxu0
    %1440 = vdwg.mxu0
    %1443 = vrot.lane.b32.xlu0 %v1312, 8
    %v1444 = vpop.permute.xlu0 %1443
    %1445 = vrot.lane.b32.xlu0 %v1396, 8
    %v1446 = vpop.permute.xlu0 %1445
    %1451 = vrot.lane.b32.xlu0 %v1333, 16
    %v1452 = vpop.permute.xlu0 %1451
    %1453 = vrot.lane.b32.xlu0 %v1417, 16
    %v1454 = vpop.permute.xlu0 %1453
    %1459 = vrot.lane.b32.xlu0 %v1354, 24
    %v1460 = vpop.permute.xlu0 %1459
    %1461 = vrot.lane.b32.xlu0 %v1438, 24
    %v1462 = vpop.permute.xlu0 %1461
    %v1465 = vsel %vm167, %v1291, %v1444
    %v1466 = vsel %vm167, %v1375, %v1446
    %v1467 = vsel %vm654, %v1465, %v1452
    %v1468 = vsel %vm654, %v1466, %v1454
    %v1469 = vsel %vm657, %v1467, %v1460
    %v1470 = vsel %vm657, %v1468, %v1462
    %v1471 = vpack.c.bf16 %v1470, %v1469
    %v1472 = vperm.slane %v21, 6
    %v1473 = vunpack.c.h.b16 %v845
    %v1474 = vunpack.c.h.b16 %v847
    %v1475 = vunpack.c.h.b16 %v849
    %v1476 = vunpack.c.h.b16 %v851
    %v1477 = vpack.c.b16 %v1474, %v1473
    %v1478 = vpack.c.b16 %v1476, %v1475
    %v1482 = vsel %vm39, %v1471, 0
    %1484 = vmatpush.bf16.msra.mxu0 0
    %1485 = vmatpush.bf16.msra.mxu0 0
    %1486 = vmatpush.bf16.msra.mxu0 0
    %1487 = vmatpush.bf16.msra.mxu0 0
    %1488 = vmatpush.bf16.msra.mxu0 0
    %1489 = vmatpush.bf16.msra.mxu0 0
    %1490 = vmatpush.bf16.msra.mxu0 %v1478
    %1491 = vmatpush.bf16.msra.mxu0 %v1477
    %1492 = vmatmul.bf16.gmra.mxu0 %v1482
    %v1493 = vpop.f32.mrf.mxu0
    %v1494 = vadd.f32 %v1472, %v1493
    %v1495 = vpop.f32.mrf.mxu0
    %v1496 = vadd.f32 %v1472, %v1495
    %1497 = vdwg.mxu0
    %v1498 = vadd.f32 %v842, %v1494
    %v1499 = vadd.f32 %v843, %v1496
    %v1500 = vsel %vm39, %v1498, 0.0
    %1501 = vadd.xlane.f32.xlu0 %v1500
    %v1502 = vpop.xlane.xlu0 %1501
    %v1503 = vsel %vm39, %v1499, 0.0
    %1504 = vadd.xlane.f32.xlu0 %v1503
    %v1505 = vpop.xlane.xlu0 %1504
    %v1506 = vmul.f32 %v1502, %v52
    %v1507 = vmul.f32 %v1505, %v52
    %v1508 = vmul.f32 %v1498, %v1498
    %v1509 = vmul.f32 %v1499, %v1499
    %v1510 = vsel %vm39, %v1508, 0.0
    %1511 = vadd.xlane.f32.xlu0 %v1510
    %v1512 = vpop.xlane.xlu0 %1511
    %v1513 = vsel %vm39, %v1509, 0.0
    %1514 = vadd.xlane.f32.xlu0 %v1513
    %v1515 = vpop.xlane.xlu0 %1514
    %v1516 = vmul.f32 %v1512, %v52
    %v1517 = vmul.f32 %v1515, %v52
    %v1518 = vmul.f32 %v1506, %v1506
    %v1519 = vmul.f32 %v1507, %v1507
    %v1520 = vsub.f32 %v1516, %v1518
    %v1521 = vsub.f32 %v1517, %v1519
    %v1522 = vsub.f32 %v1498, %v1506
    %v1523 = vsub.f32 %v1499, %v1507
    %v1524 = vadd.f32 %v1520, 1e-05
    %v1525 = vadd.f32 %v1521, 1e-05
    %v1526 = vrsqrt.pop %v1524
    %v1527 = vmul.f32 %v1526, %v1524
    %v1528 = vmul.f32 %v1527, %v1526
    %v1529 = vmul.f32 0.5, %v1528
    %v1530 = vsub.f32 1.5, %v1529
    %v1531 = vmul.f32 %v1526, %v1530
    %vm1532 = vweird.f32 %v1524
    %vm1533 = vweird.f32 %v1526
    %vm1534 = vmor %vm1532, %vm1533
    %v1535 = vsel %vm1534, %v1526, %v1531
    %v1536 = vrsqrt.pop %v1525
    %v1537 = vmul.f32 %v1536, %v1525
    %v1538 = vmul.f32 %v1537, %v1536
    %v1539 = vmul.f32 0.5, %v1538
    %v1540 = vsub.f32 1.5, %v1539
    %v1541 = vmul.f32 %v1536, %v1540
    %vm1542 = vweird.f32 %v1525
    %vm1543 = vweird.f32 %v1536
    %vm1544 = vmor %vm1542, %vm1543
    %v1545 = vsel %vm1544, %v1536, %v1541
    %v1546 = vmul.f32 %v1522, %v1535
    %v1547 = vmul.f32 %v1523, %v1545
    %v1548 = vperm.slane %v21, 5
    %v1549 = vmul.f32 %v1546, %v1548
    %v1550 = vmul.f32 %v1547, %v1548
    %1552 = vrot.lane.b32.xlu0 %v1548, 96
    %v1553 = vpop.permute.xlu0 %1552
    %v1555 = vadd.f32 %v1549, %v1553
    %v1556 = vadd.f32 %v1550, %v1553
    %v1557 = vpack.c.bf16 %v1556, %v1555
    %v1558 = vperm.slane %v21, 7
    %v1563 = vunpack.c.l.b16 %v846
    %v1564 = vunpack.c.l.b16 %v848
    %v1565 = vunpack.c.l.b16 %v850
    %v1566 = vunpack.c.l.b16 %v852
    %v1567 = vpack.c.b16 %v1564, %v1563
    %v1568 = vpack.c.b16 %v1566, %v1565
    %v1572 = vsel %vm39, %v1557, 0
    %1574 = vmatpush.bf16.msra.mxu0 0
    %1575 = vmatpush.bf16.msra.mxu0 0
    %1576 = vmatpush.bf16.msra.mxu0 0
    %1577 = vmatpush.bf16.msra.mxu0 0
    %1578 = vmatpush.bf16.msra.mxu0 0
    %1579 = vmatpush.bf16.msra.mxu0 0
    %1580 = vmatpush.bf16.msra.mxu0 %v1568
    %1581 = vmatpush.bf16.msra.mxu0 %v1567
    %1582 = vmatmul.bf16.gmra.mxu0 %v1572
    %v1583 = vpop.f32.mrf.mxu0
    %v1584 = vadd.f32 %v1558, %v1583
    %v1585 = vpop.f32.mrf.mxu0
    %v1586 = vadd.f32 %v1558, %v1585
    %1587 = vdwg.mxu0
    %v1588 = vmul.f32 %v1584, %v1584
    %v1589 = vmul.f32 %v1586, %v1586
    %v1590 = vmul.f32 %v1584, %v1588
    %v1591 = vmul.f32 %v1586, %v1589
    %v1592 = vmul.f32 %v1590, 0.044715
    %v1593 = vmul.f32 %v1591, 0.044715
    %v1594 = vadd.f32 %v1584, %v1592
    %v1595 = vadd.f32 %v1586, %v1593
    %v1596 = vmul.f32 %v1594, 0.7978846
    %v1597 = vmul.f32 %v1595, 0.7978846
    %v1598 = vtanh.pop %v1596
    %v1599 = vtanh.pop %v1597
    %v1600 = vadd.f32 %v1598, 1.0
    %v1601 = vadd.f32 %v1599, 1.0
    %v1602 = vmul.f32 %v1600, 0.5
    %v1603 = vmul.f32 %v1601, 0.5
    %v1604 = vmul.f32 %v1584, %v1602
    %v1605 = vmul.f32 %v1586, %v1603
    %v1606 = vpack.c.bf16 %v1605, %v1604
    %v1615 = vunpack.c.l.b16 %v854
    %v1616 = vunpack.c.l.b16 %v855
    %v1617 = vunpack.c.l.b16 %v856
    %v1618 = vunpack.c.l.b16 %v857
    %v1619 = vunpack.c.l.b16 %v858
    %v1620 = vunpack.c.l.b16 %v859
    %v1621 = vunpack.c.l.b16 %v860
    %v1622 = vunpack.c.l.b16 %v861
    %v1623 = vpack.c.b16 %v1616, %v1615
    %v1624 = vpack.c.b16 %v1618, %v1617
    %v1625 = vpack.c.b16 %v1620, %v1619
    %v1626 = vpack.c.b16 %v1622, %v1621
    %1632 = vrot.lane.b32.xlu0 %v1472, 96
    %v1633 = vpop.permute.xlu0 %1632
    %v1636 = vsel %vm824, %v1606, 0
    %1638 = vmatpush.bf16.msra.mxu0 0
    %1639 = vmatpush.bf16.msra.mxu0 0
    %1640 = vmatpush.bf16.msra.mxu0 0
    %1641 = vmatpush.bf16.msra.mxu0 0
    %1642 = vmatpush.bf16.msra.mxu0 %v1626
    %1643 = vmatpush.bf16.msra.mxu0 %v1625
    %1644 = vmatpush.bf16.msra.mxu0 %v1624
    %1645 = vmatpush.bf16.msra.mxu0 %v1623
    %1646 = vmatmul.bf16.gmra.mxu0 %v1636
    %v1647 = vpop.f32.mrf.mxu0
    %v1648 = vadd.f32 %v1633, %v1647
    %v1649 = vpop.f32.mrf.mxu0
    %v1650 = vadd.f32 %v1633, %v1649
    %1651 = vdwg.mxu0
    %v1652 = vadd.f32 %v1498, %v1648
    %v1653 = vadd.f32 %v1499, %v1650
    %v1654 = vsel %vm39, %v1652, 0.0
    %1655 = vadd.xlane.f32.xlu0 %v1654
    %v1656 = vpop.xlane.xlu0 %1655
    %v1657 = vsel %vm39, %v1653, 0.0
    %1658 = vadd.xlane.f32.xlu0 %v1657
    %v1659 = vpop.xlane.xlu0 %1658
    %v1660 = vmul.f32 %v1656, %v52
    %v1661 = vmul.f32 %v1659, %v52
    %v1662 = vmul.f32 %v1652, %v1652
    %v1663 = vmul.f32 %v1653, %v1653
    %v1664 = vsel %vm39, %v1662, 0.0
    %1665 = vadd.xlane.f32.xlu0 %v1664
    %v1666 = vpop.xlane.xlu0 %1665
    %v1667 = vsel %vm39, %v1663, 0.0
    %1668 = vadd.xlane.f32.xlu0 %v1667
    %v1669 = vpop.xlane.xlu0 %1668
    %v1670 = vmul.f32 %v1666, %v52
    %v1671 = vmul.f32 %v1669, %v52
    %v1672 = vmul.f32 %v1660, %v1660
    %v1673 = vmul.f32 %v1661, %v1661
    %v1674 = vsub.f32 %v1670, %v1672
    %v1675 = vsub.f32 %v1671, %v1673
    %v1676 = vsub.f32 %v1652, %v1660
    %v1677 = vsub.f32 %v1653, %v1661
    %v1678 = vadd.f32 %v1674, 1e-05
    %v1679 = vadd.f32 %v1675, 1e-05
    %v1680 = vrsqrt.pop %v1678
    %v1681 = vmul.f32 %v1680, %v1678
    %v1682 = vmul.f32 %v1681, %v1680
    %v1683 = vmul.f32 0.5, %v1682
    %v1684 = vsub.f32 1.5, %v1683
    %v1685 = vmul.f32 %v1680, %v1684
    %vm1686 = vweird.f32 %v1678
    %vm1687 = vweird.f32 %v1680
    %vm1688 = vmor %vm1686, %vm1687
    %v1689 = vsel %vm1688, %v1680, %v1685
    %v1690 = vrsqrt.pop %v1679
    %v1691 = vmul.f32 %v1690, %v1679
    %v1692 = vmul.f32 %v1691, %v1690
    %v1693 = vmul.f32 0.5, %v1692
    %v1694 = vsub.f32 1.5, %v1693
    %v1695 = vmul.f32 %v1690, %v1694
    %vm1696 = vweird.f32 %v1679
    %vm1697 = vweird.f32 %v1690
    %vm1698 = vmor %vm1696, %vm1697
    %v1699 = vsel %vm1698, %v1690, %v1695
    %v1700 = vmul.f32 %v1676, %v1689
    %v1701 = vmul.f32 %v1677, %v1699
    %v1702 = vperm.slane %v22, 0
    %v1703 = vmul.f32 %v1700, %v1702
    %v1704 = vmul.f32 %v1701, %v1702
    %1706 = vrot.lane.b32.xlu0 %v1702, 96
    %v1707 = vpop.permute.xlu0 %1706
    %v1709 = vadd.f32 %v1703, %v1707
    %v1710 = vadd.f32 %v1704, %v1707
    %1711 = vst.msk [vmem:[#allocation2] sm:$0xff] %vm39, %v1709
    %1712 = vst.msk [vmem:[#allocation2 + $0x8] sm:$0xff] %vm39, %v1710
    // Predicated region
    $region18: #{transformer_forward.1} parent=1 // pred_check
      _
    $region19: #{transformer_forward.1} parent=1 // pred_check_branch
      %1714 = sbr.rel (0) target = $region21
    $region20: #{transformer_forward.1} parent=1 // pred_region
      %1716 = vsyncadd [#allocation3], 0
      %s1717 = sshll.u32 [#allocation2], 4
      %s1718 = int_to_ptr.vmem [resolvable:$true] %s1717
      %s1719 = sshll.u32 %s4, 4
      %s1720 = int_to_ptr.hbm [resolvable:$true] %s1719
      %1725 = dma.vmem_to_hbm [thread:$0]  %s1718, 256, %s1720, [#allocation3], 128, 128, 8
    $region21: #{transformer_forward.1} parent=1 // pred_fallthru
      _
    // Predicated region
    $region22: #{transformer_forward.1} parent=1 // pred_check
      _
    $region23: #{transformer_forward.1} parent=1 // pred_check_branch
      %1727 = sbr.rel (0) target = $region25
    $region24: #{transformer_forward.1} parent=1 // pred_region
      %1729 = dma.done [#allocation3], 256
    $region25: #{transformer_forward.1} parent=1 // pred_fallthru
      _
    %1730 = vsyncpa [#allocation3], 1

</llo_original>
